<compile_context>
chip_gen: v7x
topology: tpu7x:2x2x1
jax: 0.10.0
libtpu: 0.0.40
codegen_flags: <defaults>
</compile_context>

<pallas_src>
import functools

import jax
import jax.numpy as jnp
from jax import lax
from jax.experimental import pallas as pl
from jax.experimental.pallas import tpu as pltpu

LANE = 128   # lane-padded feature width for pooled / head activations
NC = 2       # M-reduction shards; maps to the two TensorCores on v7x


def _round_up(x, m):
    return ((x + m - 1) // m) * m


def _cdiv(a, b):
    return -(-a // b)


# ---------------------------------------------------------------------------
# Kernel 1: point encoder + in-kernel segment-mean pooling.
# Grid = (NC, tiles_per_core); axis 0 is "parallel" (per-core partial pools),
# axis 1 is the "arbitrary" reduction over M tiles.
# ---------------------------------------------------------------------------
def _encode_pool_kernel(pts_ref, w1_ref, b1_ref, w2_ref, b2_ref, pool_ref, *,
                        tm, tiles_per_core, batch, bp, nv, nf):
    c = pl.program_id(0)
    i = pl.program_id(1)

    @pl.when(i == 0)
    def _():
        pool_ref[...] = jnp.zeros_like(pool_ref)

    # Point encoder: relu(relu(x @ w1 + b1) @ w2 + b2). bf16 MXU, f32 epilogue.
    h = jnp.dot(pts_ref[...], w1_ref[...], preferred_element_type=jnp.float32)
    h = jnp.maximum(h + b1_ref[...], 0.0)
    h = jnp.dot(h.astype(jnp.bfloat16), w2_ref[...],
                preferred_element_type=jnp.float32)
    h = jnp.maximum(h + b2_ref[...], 0.0)                     # (tm, LANE) f32

    # Segment-mean pooling weights generated in-kernel (no HBM pooling matrix).
    # Pool slot s < bp  -> mean over vertices of batch s   (weight 1/nv)
    # Pool slot s >= bp -> mean over centroids of batch s-bp (weight 1/nf)
    # Padded point rows / padded batch slots get zero weight.
    n_v = batch * nv
    row0 = (c * tiles_per_core + i) * tm
    shape = (2 * bp, tm)
    r = row0 + lax.broadcasted_iota(jnp.int32, shape, 1)       # global point row
    s = lax.broadcasted_iota(jnp.int32, shape, 0)              # pool slot
    is_vslot = s < bp
    b = jnp.where(is_vslot, s, s - bp)
    start = jnp.where(is_vslot, b * nv, n_v + b * nf)
    end = start + jnp.where(is_vslot, nv, nf)
    wgt = jnp.where(is_vslot, 1.0 / nv, 1.0 / nf)
    pw = jnp.where((r >= start) & (r < end) & (b < batch), wgt, 0.0)

    pool_ref[...] += jnp.dot(pw.astype(jnp.bfloat16), h.astype(jnp.bfloat16),
                             preferred_element_type=jnp.float32)


# ---------------------------------------------------------------------------
# Kernel 2: combine per-core partial pools + fusion head (w3 / w4).
# Tiny (<= 8 batch rows); single grid step, everything VMEM-resident.
# ---------------------------------------------------------------------------
def _head_kernel(part_ref, geo_ref, em_ref,
                 w3v_ref, w3f_ref, w3g_ref, w3e_ref, b3_ref,
                 w4_ref, b4_ref, o_ref, *, bp, nc):
    pool = part_ref[0]
    for k in range(1, nc):
        pool = pool + part_ref[k]                              # (2*bp, LANE) f32
    v_pool = pool[0:bp, :].astype(jnp.bfloat16)
    f_pool = pool[bp:2 * bp, :].astype(jnp.bfloat16)
    fused = (
        jnp.dot(v_pool, w3v_ref[...], preferred_element_type=jnp.float32)
        + jnp.dot(f_pool, w3f_ref[...], preferred_element_type=jnp.float32)
        + jnp.dot(geo_ref[...], w3g_ref[...], preferred_element_type=jnp.float32)
        + jnp.dot(em_ref[...], w3e_ref[...], preferred_element_type=jnp.float32)
        + b3_ref[...]
    )
    fused = jnp.maximum(fused, 0.0)
    pred = jnp.dot(fused.astype(jnp.bfloat16), w4_ref[...],
                   preferred_element_type=jnp.float32)
    o_ref[...] = (pred + b4_ref[...]).astype(o_ref.dtype)


def fused_mesh_em_forward(params, vertices, faces, geoinfo, in_em, *, out_dim):
    """Forward pass: encoder+pool pallas_call, then a micro head pallas_call."""
    B, Nv, _ = vertices.shape
    Nf = faces.shape[1]
    G = geoinfo.shape[1]
    E = in_em.shape[1]

    # ---- XLA-side glue: data-dependent face-vertex gather + row packing.
    # TODO(synk): the vertex-index gather has no clean rectangular BlockSpec,
    # so it stays in XLA; everything dense runs in the Pallas kernels.
    verts_f32 = vertices.astype(jnp.float32)
    face_verts = jax.vmap(lambda v, f: v[f])(verts_f32, faces)   # [B, Nf, 3, 3]
    centroids = jnp.mean(face_verts, axis=2)                     # [B, Nf, 3]
    pts = jnp.concatenate(
        [verts_f32.reshape(B * Nv, 3), centroids.reshape(B * Nf, 3)],
        axis=0).astype(jnp.bfloat16)

    M = B * (Nv + Nf)
    rows_per_core = _cdiv(M, NC)
    TM = min(1024, max(128, _round_up(rows_per_core, 128)))
    tiles_per_core = _cdiv(rows_per_core, TM)
    Mp = NC * tiles_per_core * TM
    pts = jnp.pad(pts, ((0, Mp - M), (0, 0)))                    # masked in-kernel

    Bp = _round_up(B, 8)
    H1 = params["w1"].shape[1]

    enc_kernel = functools.partial(
        _encode_pool_kernel, tm=TM, tiles_per_core=tiles_per_core,
        batch=B, bp=Bp, nv=Nv, nf=Nf)
    const2 = lambda c, i: (0, 0)

    partial_pools = pl.pallas_call(
        enc_kernel,
        out_shape=jax.ShapeDtypeStruct((NC, 2 * Bp, LANE), jnp.float32),
        grid=(NC, tiles_per_core),
        in_specs=[
            pl.BlockSpec((TM, 3), lambda c, i: (c * tiles_per_core + i, 0)),
            pl.BlockSpec((3, H1), const2),      # w1 (bf16)
            pl.BlockSpec((1, H1), const2),      # b1 (f32)
            pl.BlockSpec((H1, LANE), const2),   # w2 (bf16)
            pl.BlockSpec((1, LANE), const2),    # b2 (f32)
        ],
        out_specs=pl.BlockSpec((None, 2 * Bp, LANE), lambda c, i: (c, 0, 0)),
        compiler_params=pltpu.CompilerParams(
            dimension_semantics=("parallel", "arbitrary"),
            vmem_limit_bytes=32 * 1024 * 1024,
        ),
    )(pts, params["w1"], params["b1"], params["w2"], params["b2"])

    geo_p = jnp.pad(geoinfo.astype(jnp.bfloat16), ((0, Bp - B), (0, 0)))
    em_p = jnp.pad(in_em.astype(jnp.bfloat16), ((0, Bp - B), (0, 0)))

    head_kernel = functools.partial(_head_kernel, bp=Bp, nc=NC)
    const1 = lambda i: (0, 0)
    pred = pl.pallas_call(
        head_kernel,
        out_shape=jax.ShapeDtypeStruct((Bp, LANE), jnp.float32),
        grid=(1,),
        in_specs=[
            pl.BlockSpec((NC, 2 * Bp, LANE), lambda i: (0, 0, 0)),
            pl.BlockSpec((Bp, G), const1),       # geoinfo
            pl.BlockSpec((Bp, E), const1),       # in_em
            pl.BlockSpec((LANE, LANE), const1),  # w3 (vertex-pool part)
            pl.BlockSpec((LANE, LANE), const1),  # w3 (face-pool part)
            pl.BlockSpec((G, LANE), const1),     # w3 (geoinfo part)
            pl.BlockSpec((E, LANE), const1),     # w3 (in_em part)
            pl.BlockSpec((1, LANE), const1),     # b3
            pl.BlockSpec((LANE, LANE), const1),  # w4
            pl.BlockSpec((1, LANE), const1),     # b4
        ],
        out_specs=pl.BlockSpec((Bp, LANE), const1),
        compiler_params=pltpu.CompilerParams(
            dimension_semantics=("arbitrary",)),
    )(partial_pools, geo_p, em_p,
      params["w3v"], params["w3f"], params["w3g"], params["w3e"], params["b3"],
      params["w4"], params["b4"])

    return pred[:B, :out_dim]


# ---------------------------------------------------------------------------
# Synthetic inner model (the reference wrapper does not define one).
# TODO(synk): the wrapped model architecture is not specified by WrappedModel;
#             this is a deterministic stand-in with the same call signature.
# ---------------------------------------------------------------------------
class SyntheticEMModel:
    def __init__(self, key, hidden=32, out_dim=16, geo_dim=4, em_dim=4):
        assert hidden <= LANE and out_dim <= LANE
        ks = jax.random.split(key, 8)
        scale = 0.1
        H, O = hidden, out_dim
        H1 = _round_up(H, 8)
        w1 = scale * jax.random.normal(ks[0], (3, H), jnp.float32)
        w2 = scale * jax.random.normal(ks[1], (H, H), jnp.float32)
        w3 = scale * jax.random.normal(ks[2], (2 * H + geo_dim + em_dim, H),
                                       jnp.float32)
        w4 = scale * jax.random.normal(ks[3], (H, O), jnp.float32)
        b1 = scale * jax.random.normal(ks[4], (H,), jnp.float32)
        b2 = scale * jax.random.normal(ks[5], (H,), jnp.float32)
        b3 = scale * jax.random.normal(ks[6], (H,), jnp.float32)
        b4 = scale * jax.random.normal(ks[7], (O,), jnp.float32)

        def padw(w, rows, cols):  # zero-padded bf16 MXU weight
            out = jnp.zeros((rows, cols), jnp.float32)
            return out.at[:w.shape[0], :w.shape[1]].set(w).astype(jnp.bfloat16)

        def padb(b, cols):        # zero-padded f32 bias (padded lanes stay 0)
            return jnp.zeros((1, cols), jnp.float32).at[0, :b.shape[0]].set(b)

        self.params = {
            "w1": padw(w1, 3, H1),
            "b1": padb(b1, H1),
            "w2": padw(w2, H1, LANE),            # logical contraction dim H1
            "b2": padb(b2, LANE),
            "w3v": padw(w3[:H], LANE, LANE),
            "w3f": padw(w3[H:2 * H], LANE, LANE),
            "w3g": padw(w3[2 * H:2 * H + geo_dim], geo_dim, LANE),
            "w3e": padw(w3[2 * H + geo_dim:], em_dim, LANE),
            "b3": padb(b3, LANE),
            "w4": padw(w4, LANE, LANE),
            "b4": padb(b4, LANE),
        }
        self.out_dim = O
        self._fwd = jax.jit(functools.partial(fused_mesh_em_forward, out_dim=O))

    def __call__(self, *, vertices, faces, geoinfo, in_em, GT):
        # TODO(synk): GT is forwarded by the wrapper but never consumed here
        # (loss computation lives outside the reference module).
        del GT
        return self._fwd(self.params, vertices, faces, geoinfo, in_em)


class WrappedModel:
    """JAX equivalent of the PyTorch WrappedModel dispatcher."""

    def __init__(self, model):
        self.model = model

    def __call__(self, *inputs):
        return self.model(
            vertices=inputs[0],
            faces=inputs[1],
            geoinfo=inputs[2],
            in_em=inputs[3],
            GT=inputs[4],
        )


# ---------------------------------------------------------------------------
if __name__ == "__main__":
    B, Nv, Nf = 2, 64, 32
    G, E, O = 4, 4, 16

    key = jax.random.PRNGKey(0)
    k_v, k_f, k_g, k_e, k_gt, k_param = jax.random.split(key, 6)

    vertices = jax.random.normal(k_v, (B, Nv, 3), jnp.float32)
    faces = jax.random.randint(k_f, (B, Nf, 3), 0, Nv, jnp.int32)
    geoinfo = jax.random.normal(k_g, (B, G), jnp.float32)
    in_em = jax.random.normal(k_e, (B, E), jnp.float32)
    GT = jax.random.normal(k_gt, (B, O), jnp.float32)

    model = WrappedModel(SyntheticEMModel(k_param, hidden=32, out_dim=O,
                                          geo_dim=G, em_dim=E))

    out = model(vertices, faces, geoinfo, in_em, GT)
    jax.block_until_ready(out)
    assert out.shape == (B, O) and out.dtype == jnp.float32
    print("KERNEL_OK")
</pallas_src>

<mosaic_0001>
module attributes {stable_mosaic.version = 11 : i64} {
  func.func @_head_kernel(%arg0: i32, %arg1: memref<2x16x128xf32, #tpu.memory_space<vmem>>, %arg2: memref<8x4xbf16, #tpu.memory_space<vmem>>, %arg3: memref<8x4xbf16, #tpu.memory_space<vmem>>, %arg4: memref<128x128xbf16, #tpu.memory_space<vmem>>, %arg5: memref<128x128xbf16, #tpu.memory_space<vmem>>, %arg6: memref<4x128xbf16, #tpu.memory_space<vmem>>, %arg7: memref<4x128xbf16, #tpu.memory_space<vmem>>, %arg8: memref<1x128xf32, #tpu.memory_space<vmem>>, %arg9: memref<128x128xbf16, #tpu.memory_space<vmem>>, %arg10: memref<1x128xf32, #tpu.memory_space<vmem>>, %arg11: memref<8x128xf32, #tpu.memory_space<vmem>>) attributes {dimension_semantics = [#tpu.dimension_semantics<arbitrary>], iteration_bounds = array<i64: 1>, scalar_prefetch = 0 : i64, scratch_operands = 0 : i64, tpu.core_type = #tpu.core_type<tc>, window_params = [{pipeline_mode = #tpu.pipeline_mode<synchronous>, transform_indices = @transform_0, window_bounds = array<i64: 2, 16, 128>}, {pipeline_mode = #tpu.pipeline_mode<synchronous>, transform_indices = @transform_1, window_bounds = array<i64: 8, 4>}, {pipeline_mode = #tpu.pipeline_mode<synchronous>, transform_indices = @transform_2, window_bounds = array<i64: 8, 4>}, {pipeline_mode = #tpu.pipeline_mode<synchronous>, transform_indices = @transform_3, window_bounds = array<i64: 128, 128>}, {pipeline_mode = #tpu.pipeline_mode<synchronous>, transform_indices = @transform_4, window_bounds = array<i64: 128, 128>}, {pipeline_mode = #tpu.pipeline_mode<synchronous>, transform_indices = @transform_5, window_bounds = array<i64: 4, 128>}, {pipeline_mode = #tpu.pipeline_mode<synchronous>, transform_indices = @transform_6, window_bounds = array<i64: 4, 128>}, {pipeline_mode = #tpu.pipeline_mode<synchronous>, transform_indices = @transform_7, window_bounds = array<i64: 1, 128>}, {pipeline_mode = #tpu.pipeline_mode<synchronous>, transform_indices = @transform_8, window_bounds = array<i64: 128, 128>}, {pipeline_mode = #tpu.pipeline_mode<synchronous>, transform_indices = @transform_9, window_bounds = array<i64: 1, 128>}, {pipeline_mode = #tpu.pipeline_mode<synchronous>, transform_indices = @transform_10, window_bounds = array<i64: 8, 128>}]} {
    %c0 = arith.constant 0 : index
    %c0_0 = arith.constant 0 : index
    %c0_1 = arith.constant 0 : index
    %0 = vector.load %arg1[%c0, %c0_0, %c0_1] : memref<2x16x128xf32, #tpu.memory_space<vmem>>, vector<1x16x128xf32>
    %1 = vector.shape_cast %0 : vector<1x16x128xf32> to vector<16x128xf32>
    %c1 = arith.constant 1 : index
    %c0_2 = arith.constant 0 : index
    %c0_3 = arith.constant 0 : index
    %2 = vector.load %arg1[%c1, %c0_2, %c0_3] : memref<2x16x128xf32, #tpu.memory_space<vmem>>, vector<1x16x128xf32>
    %3 = vector.shape_cast %2 : vector<1x16x128xf32> to vector<16x128xf32>
    %4 = arith.addf %1, %3 : vector<16x128xf32>
    %5 = vector.extract_strided_slice %4 {offsets = [0, 0], sizes = [8, 128], strides = [1, 1]} : vector<16x128xf32> to vector<8x128xf32>
    %6 = arith.truncf %5 : vector<8x128xf32> to vector<8x128xbf16>
    %7 = vector.extract_strided_slice %4 {offsets = [8, 0], sizes = [8, 128], strides = [1, 1]} : vector<16x128xf32> to vector<8x128xf32>
    %8 = arith.truncf %7 : vector<8x128xf32> to vector<8x128xbf16>
    %c0_4 = arith.constant 0 : index
    %c0_5 = arith.constant 0 : index
    %9 = vector.load %arg4[%c0_4, %c0_5] : memref<128x128xbf16, #tpu.memory_space<vmem>>, vector<128x128xbf16>
    %cst = arith.constant dense<0.000000e+00> : vector<8x128xf32>
    %10 = tpu.matmul %6, %9, %cst {dimension_numbers = #tpu.dot_dimension_numbers<[1], [0], [0], [1], [0, 0, 1, 1], [], []>} : vector<8x128xbf16>, vector<128x128xbf16>, vector<8x128xf32> -> vector<8x128xf32>
    %c0_6 = arith.constant 0 : index
    %c0_7 = arith.constant 0 : index
    %11 = vector.load %arg5[%c0_6, %c0_7] : memref<128x128xbf16, #tpu.memory_space<vmem>>, vector<128x128xbf16>
    %cst_8 = arith.constant dense<0.000000e+00> : vector<8x128xf32>
    %12 = tpu.matmul %8, %11, %cst_8 {dimension_numbers = #tpu.dot_dimension_numbers<[1], [0], [0], [1], [0, 0, 1, 1], [], []>} : vector<8x128xbf16>, vector<128x128xbf16>, vector<8x128xf32> -> vector<8x128xf32>
    %13 = arith.addf %10, %12 : vector<8x128xf32>
    %c0_9 = arith.constant 0 : index
    %c0_10 = arith.constant 0 : index
    %14 = vector.load %arg2[%c0_9, %c0_10] : memref<8x4xbf16, #tpu.memory_space<vmem>>, vector<8x4xbf16>
    %c0_11 = arith.constant 0 : index
    %c0_12 = arith.constant 0 : index
    %15 = vector.load %arg6[%c0_11, %c0_12] : memref<4x128xbf16, #tpu.memory_space<vmem>>, vector<4x128xbf16>
    %cst_13 = arith.constant dense<0.000000e+00> : vector<8x128xf32>
    %16 = tpu.matmul %14, %15, %cst_13 {dimension_numbers = #tpu.dot_dimension_numbers<[1], [0], [0], [1], [0, 0, 1, 1], [], []>} : vector<8x4xbf16>, vector<4x128xbf16>, vector<8x128xf32> -> vector<8x128xf32>
    %17 = arith.addf %13, %16 : vector<8x128xf32>
    %c0_14 = arith.constant 0 : index
    %c0_15 = arith.constant 0 : index
    %18 = vector.load %arg3[%c0_14, %c0_15] : memref<8x4xbf16, #tpu.memory_space<vmem>>, vector<8x4xbf16>
    %c0_16 = arith.constant 0 : index
    %c0_17 = arith.constant 0 : index
    %19 = vector.load %arg7[%c0_16, %c0_17] : memref<4x128xbf16, #tpu.memory_space<vmem>>, vector<4x128xbf16>
    %cst_18 = arith.constant dense<0.000000e+00> : vector<8x128xf32>
    %20 = tpu.matmul %18, %19, %cst_18 {dimension_numbers = #tpu.dot_dimension_numbers<[1], [0], [0], [1], [0, 0, 1, 1], [], []>} : vector<8x4xbf16>, vector<4x128xbf16>, vector<8x128xf32> -> vector<8x128xf32>
    %21 = arith.addf %17, %20 : vector<8x128xf32>
    %c0_19 = arith.constant 0 : index
    %c0_20 = arith.constant 0 : index
    %22 = vector.load %arg8[%c0_19, %c0_20] : memref<1x128xf32, #tpu.memory_space<vmem>>, vector<1x128xf32>
    %23 = vector.broadcast %22 : vector<1x128xf32> to vector<8x128xf32>
    %24 = arith.addf %21, %23 : vector<8x128xf32>
    %cst_21 = arith.constant 0.000000e+00 : f32
    %25 = vector.broadcast %cst_21 : f32 to vector<8x128xf32>
    %26 = arith.maximumf %24, %25 : vector<8x128xf32>
    %27 = arith.truncf %26 : vector<8x128xf32> to vector<8x128xbf16>
    %c0_22 = arith.constant 0 : index
    %c0_23 = arith.constant 0 : index
    %28 = vector.load %arg9[%c0_22, %c0_23] : memref<128x128xbf16, #tpu.memory_space<vmem>>, vector<128x128xbf16>
    %cst_24 = arith.constant dense<0.000000e+00> : vector<8x128xf32>
    %29 = tpu.matmul %27, %28, %cst_24 {dimension_numbers = #tpu.dot_dimension_numbers<[1], [0], [0], [1], [0, 0, 1, 1], [], []>} : vector<8x128xbf16>, vector<128x128xbf16>, vector<8x128xf32> -> vector<8x128xf32>
    %c0_25 = arith.constant 0 : index
    %c0_26 = arith.constant 0 : index
    %30 = vector.load %arg10[%c0_25, %c0_26] : memref<1x128xf32, #tpu.memory_space<vmem>>, vector<1x128xf32>
    %31 = vector.broadcast %30 : vector<1x128xf32> to vector<8x128xf32>
    %32 = arith.addf %29, %31 : vector<8x128xf32>
    %c0_27 = arith.constant 0 : index
    %c0_28 = arith.constant 0 : index
    %33 = vector.load %arg11[%c0_27, %c0_28] : memref<8x128xf32, #tpu.memory_space<vmem>>, vector<8x128xf32>
    tpu.vector_store %arg11[%c0_27, %c0_28], %32 {strides = array<i32>} : memref<8x128xf32, #tpu.memory_space<vmem>>, vector<8x128xf32>,
    return
  }
  func.func @transform_0(%arg0: i32) -> (i32, i32, i32) {
    %c0_i32 = arith.constant 0 : i32
    %c0_i32_0 = arith.constant 0 : i32
    %c0_i32_1 = arith.constant 0 : i32
    %c0_i32_2 = arith.constant 0 : i32
    return %c0_i32, %c0_i32_0, %c0_i32_1 : i32, i32, i32
  }
  func.func @transform_1(%arg0: i32) -> (i32, i32) {
    %c0_i32 = arith.constant 0 : i32
    %c0_i32_0 = arith.constant 0 : i32
    %c0_i32_1 = arith.constant 0 : i32
    return %c0_i32, %c0_i32_0 : i32, i32
  }
  func.func @transform_2(%arg0: i32) -> (i32, i32) {
    %c0_i32 = arith.constant 0 : i32
    %c0_i32_0 = arith.constant 0 : i32
    %c0_i32_1 = arith.constant 0 : i32
    return %c0_i32, %c0_i32_0 : i32, i32
  }
  func.func @transform_3(%arg0: i32) -> (i32, i32) {
    %c0_i32 = arith.constant 0 : i32
    %c0_i32_0 = arith.constant 0 : i32
    %c0_i32_1 = arith.constant 0 : i32
    return %c0_i32, %c0_i32_0 : i32, i32
  }
  func.func @transform_4(%arg0: i32) -> (i32, i32) {
    %c0_i32 = arith.constant 0 : i32
    %c0_i32_0 = arith.constant 0 : i32
    %c0_i32_1 = arith.constant 0 : i32
    return %c0_i32, %c0_i32_0 : i32, i32
  }
  func.func @transform_5(%arg0: i32) -> (i32, i32) {
    %c0_i32 = arith.constant 0 : i32
    %c0_i32_0 = arith.constant 0 : i32
    %c0_i32_1 = arith.constant 0 : i32
    return %c0_i32, %c0_i32_0 : i32, i32
  }
  func.func @transform_6(%arg0: i32) -> (i32, i32) {
    %c0_i32 = arith.constant 0 : i32
    %c0_i32_0 = arith.constant 0 : i32
    %c0_i32_1 = arith.constant 0 : i32
    return %c0_i32, %c0_i32_0 : i32, i32
  }
  func.func @transform_7(%arg0: i32) -> (i32, i32) {
    %c0_i32 = arith.constant 0 : i32
    %c0_i32_0 = arith.constant 0 : i32
    %c0_i32_1 = arith.constant 0 : i32
    return %c0_i32, %c0_i32_0 : i32, i32
  }
  func.func @transform_8(%arg0: i32) -> (i32, i32) {
    %c0_i32 = arith.constant 0 : i32
    %c0_i32_0 = arith.constant 0 : i32
    %c0_i32_1 = arith.constant 0 : i32
    return %c0_i32, %c0_i32_0 : i32, i32
  }
  func.func @transform_9(%arg0: i32) -> (i32, i32) {
    %c0_i32 = arith.constant 0 : i32
    %c0_i32_0 = arith.constant 0 : i32
    %c0_i32_1 = arith.constant 0 : i32
    return %c0_i32, %c0_i32_0 : i32, i32
  }
  func.func @transform_10(%arg0: i32) -> (i32, i32) {
    %c0_i32 = arith.constant 0 : i32
    %c0_i32_0 = arith.constant 0 : i32
    %c0_i32_1 = arith.constant 0 : i32
    return %c0_i32, %c0_i32_0 : i32, i32
  }
}

module attributes {stable_mosaic.version = 11 : i64} {
  func.func @_encode_pool_kernel(%arg0: i32, %arg1: i32, %arg2: memref<128x3xbf16, #tpu.memory_space<vmem>>, %arg3: memref<3x32xbf16, #tpu.memory_space<vmem>>, %arg4: memref<1x32xf32, #tpu.memory_space<vmem>>, %arg5: memref<32x128xbf16, #tpu.memory_space<vmem>>, %arg6: memref<1x128xf32, #tpu.memory_space<vmem>>, %arg7: memref<1x16x128xf32, #tpu.memory_space<vmem>>) attributes {dimension_semantics = [#tpu.dimension_semantics<parallel>, #tpu.dimension_semantics<arbitrary>], iteration_bounds = array<i64: 2, 1>, scalar_prefetch = 0 : i64, scratch_operands = 0 : i64, tpu.core_type = #tpu.core_type<tc>, window_params = [{transform_indices = @transform_0, window_bounds = array<i64: 128, 3>}, {pipeline_mode = #tpu.pipeline_mode<synchronous>, transform_indices = @transform_1, window_bounds = array<i64: 3, 32>}, {pipeline_mode = #tpu.pipeline_mode<synchronous>, transform_indices = @transform_2, window_bounds = array<i64: 1, 32>}, {pipeline_mode = #tpu.pipeline_mode<synchronous>, transform_indices = @transform_3, window_bounds = array<i64: 32, 128>}, {pipeline_mode = #tpu.pipeline_mode<synchronous>, transform_indices = @transform_4, window_bounds = array<i64: 1, 128>}, {transform_indices = @transform_5, window_bounds = array<i64: 1, 16, 128>}]} {
    %c0_i32 = arith.constant 0 : i32
    %0 = arith.cmpi eq, %arg1, %c0_i32 : i32
    %1 = arith.extui %0 : i1 to i32
    %c0_i32_0 = arith.constant 0 : i32
    %2 = arith.cmpi ne, %1, %c0_i32_0 : i32
    scf.if %2 {
      %cst_27 = arith.constant 0.000000e+00 : f32
      %62 = vector.broadcast %cst_27 : f32 to vector<16x128xf32>
      %c0_28 = arith.constant 0 : index
      %c0_29 = arith.constant 0 : index
      %c0_30 = arith.constant 0 : index
      %63 = vector.load %arg7[%c0_28, %c0_29, %c0_30] : memref<1x16x128xf32, #tpu.memory_space<vmem>>, vector<1x16x128xf32>
      %64 = vector.shape_cast %63 : vector<1x16x128xf32> to vector<16x128xf32>
      %65 = vector.shape_cast %62 : vector<16x128xf32> to vector<1x16x128xf32>
      tpu.vector_store %arg7[%c0_28, %c0_29, %c0_30], %65 {strides = array<i32>} : memref<1x16x128xf32, #tpu.memory_space<vmem>>, vector<1x16x128xf32>,
    } else {
    }
    %c0 = arith.constant 0 : index
    %c0_1 = arith.constant 0 : index
    %3 = vector.load %arg2[%c0, %c0_1] : memref<128x3xbf16, #tpu.memory_space<vmem>>, vector<128x3xbf16>
    %c0_2 = arith.constant 0 : index
    %c0_3 = arith.constant 0 : index
    %4 = vector.load %arg3[%c0_2, %c0_3] : memref<3x32xbf16, #tpu.memory_space<vmem>>, vector<3x32xbf16>
    %cst = arith.constant dense<0.000000e+00> : vector<128x32xf32>
    %5 = tpu.matmul %3, %4, %cst {dimension_numbers = #tpu.dot_dimension_numbers<[1], [0], [0], [1], [0, 0, 1, 1], [], []>} : vector<128x3xbf16>, vector<3x32xbf16>, vector<128x32xf32> -> vector<128x32xf32>
    %c0_4 = arith.constant 0 : index
    %c0_5 = arith.constant 0 : index
    %6 = vector.load %arg4[%c0_4, %c0_5] : memref<1x32xf32, #tpu.memory_space<vmem>>, vector<1x32xf32>
    %7 = vector.broadcast %6 : vector<1x32xf32> to vector<128x32xf32>
    %8 = arith.addf %5, %7 : vector<128x32xf32>
    %cst_6 = arith.constant 0.000000e+00 : f32
    %9 = vector.broadcast %cst_6 : f32 to vector<128x32xf32>
    %10 = arith.maximumf %8, %9 : vector<128x32xf32>
    %11 = arith.truncf %10 : vector<128x32xf32> to vector<128x32xbf16>
    %c0_7 = arith.constant 0 : index
    %c0_8 = arith.constant 0 : index
    %12 = vector.load %arg5[%c0_7, %c0_8] : memref<32x128xbf16, #tpu.memory_space<vmem>>, vector<32x128xbf16>
    %cst_9 = arith.constant dense<0.000000e+00> : vector<128x128xf32>
    %13 = tpu.matmul %11, %12, %cst_9 {dimension_numbers = #tpu.dot_dimension_numbers<[1], [0], [0], [1], [0, 0, 1, 1], [], []>} : vector<128x32xbf16>, vector<32x128xbf16>, vector<128x128xf32> -> vector<128x128xf32>
    %c0_10 = arith.constant 0 : index
    %c0_11 = arith.constant 0 : index
    %14 = vector.load %arg6[%c0_10, %c0_11] : memref<1x128xf32, #tpu.memory_space<vmem>>, vector<1x128xf32>
    %15 = vector.broadcast %14 : vector<1x128xf32> to vector<128x128xf32>
    %16 = arith.addf %13, %15 : vector<128x128xf32>
    %cst_12 = arith.constant 0.000000e+00 : f32
    %17 = vector.broadcast %cst_12 : f32 to vector<128x128xf32>
    %18 = arith.maximumf %16, %17 : vector<128x128xf32>
    %c1_i32 = arith.constant 1 : i32
    %19 = arith.muli %arg0, %c1_i32 : i32
    %20 = arith.addi %19, %arg1 : i32
    %c128_i32 = arith.constant 128 : i32
    %21 = arith.muli %20, %c128_i32 : i32
    %22 = tpu.iota {dimensions = array<i32: 1>} : vector<16x128xi32>
    %23 = vector.broadcast %21 : i32 to vector<16x128xi32>
    %24 = arith.addi %23, %22 : vector<16x128xi32>
    %25 = tpu.iota {dimensions = array<i32: 0>} : vector<16x128xi32>
    %c8_i32 = arith.constant 8 : i32
    %26 = vector.broadcast %c8_i32 : i32 to vector<16x128xi32>
    %27 = arith.cmpi slt, %25, %26 : vector<16x128xi32>
    %c8_i32_13 = arith.constant 8 : i32
    %28 = vector.broadcast %c8_i32_13 : i32 to vector<16x128xi32>
    %29 = arith.subi %25, %28 : vector<16x128xi32>
    %30 = arith.select %27, %25, %29 : vector<16x128xi1>, vector<16x128xi32>
    %c64_i32 = arith.constant 64 : i32
    %31 = vector.broadcast %c64_i32 : i32 to vector<16x128xi32>
    %32 = arith.muli %30, %31 : vector<16x128xi32>
    %c32_i32 = arith.constant 32 : i32
    %33 = vector.broadcast %c32_i32 : i32 to vector<16x128xi32>
    %34 = arith.muli %30, %33 : vector<16x128xi32>
    %c128_i32_14 = arith.constant 128 : i32
    %35 = vector.broadcast %c128_i32_14 : i32 to vector<16x128xi32>
    %36 = arith.addi %35, %34 : vector<16x128xi32>
    %37 = arith.select %27, %32, %36 : vector<16x128xi1>, vector<16x128xi32>
    %c64_i32_15 = arith.constant 64 : i32
    %c32_i32_16 = arith.constant 32 : i32
    %38 = vector.broadcast %c64_i32_15 : i32 to vector<16x128xi32>
    %39 = vector.broadcast %c32_i32_16 : i32 to vector<16x128xi32>
    %40 = arith.select %27, %38, %39 : vector<16x128xi1>, vector<16x128xi32>
    %41 = arith.addi %37, %40 : vector<16x128xi32>
    %cst_17 = arith.constant 1.562500e-02 : f32
    %cst_18 = arith.constant 3.125000e-02 : f32
    %42 = vector.broadcast %cst_17 : f32 to vector<16x128xf32>
    %43 = vector.broadcast %cst_18 : f32 to vector<16x128xf32>
    %44 = arith.select %27, %42, %43 : vector<16x128xi1>, vector<16x128xf32>
    %45 = arith.cmpi sge, %24, %37 : vector<16x128xi32>
    %46 = arith.cmpi slt, %24, %41 : vector<16x128xi32>
    %47 = arith.andi %45, %46 : vector<16x128xi1>
    %c2_i32 = arith.constant 2 : i32
    %48 = vector.broadcast %c2_i32 : i32 to vector<16x128xi32>
    %49 = arith.cmpi slt, %30, %48 : vector<16x128xi32>
    %50 = arith.andi %47, %49 : vector<16x128xi1>
    %cst_19 = arith.constant 0.000000e+00 : f32
    %51 = vector.broadcast %cst_19 : f32 to vector<16x128xf32>
    %52 = arith.select %50, %44, %51 : vector<16x128xi1>, vector<16x128xf32>
    %c0_20 = arith.constant 0 : index
    %c0_21 = arith.constant 0 : index
    %c0_22 = arith.constant 0 : index
    %53 = vector.load %arg7[%c0_20, %c0_21, %c0_22] : memref<1x16x128xf32, #tpu.memory_space<vmem>>, vector<1x16x128xf32>
    %54 = vector.shape_cast %53 : vector<1x16x128xf32> to vector<16x128xf32>
    %55 = arith.truncf %52 : vector<16x128xf32> to vector<16x128xbf16>
    %56 = arith.truncf %18 : vector<128x128xf32> to vector<128x128xbf16>
    %cst_23 = arith.constant dense<0.000000e+00> : vector<16x128xf32>
    %57 = tpu.matmul %55, %56, %cst_23 {dimension_numbers = #tpu.dot_dimension_numbers<[1], [0], [0], [1], [0, 0, 1, 1], [], []>} : vector<16x128xbf16>, vector<128x128xbf16>, vector<16x128xf32> -> vector<16x128xf32>
    %58 = arith.addf %54, %57 : vector<16x128xf32>
    %c0_24 = arith.constant 0 : index
    %c0_25 = arith.constant 0 : index
    %c0_26 = arith.constant 0 : index
    %59 = vector.load %arg7[%c0_24, %c0_25, %c0_26] : memref<1x16x128xf32, #tpu.memory_space<vmem>>, vector<1x16x128xf32>
    %60 = vector.shape_cast %59 : vector<1x16x128xf32> to vector<16x128xf32>
    %61 = vector.shape_cast %58 : vector<16x128xf32> to vector<1x16x128xf32>
    tpu.vector_store %arg7[%c0_24, %c0_25, %c0_26], %61 {strides = array<i32>} : memref<1x16x128xf32, #tpu.memory_space<vmem>>, vector<1x16x128xf32>,
    return
  }
  func.func @transform_0(%arg0: i32, %arg1: i32) -> (i32, i32) {
    %c1_i32 = arith.constant 1 : i32
    %0 = arith.muli %arg0, %c1_i32 : i32
    %1 = arith.addi %0, %arg1 : i32
    %c0_i32 = arith.constant 0 : i32
    %c0_i32_0 = arith.constant 0 : i32
    return %1, %c0_i32 : i32, i32
  }
  func.func @transform_1(%arg0: i32, %arg1: i32) -> (i32, i32) {
    %c0_i32 = arith.constant 0 : i32
    %c0_i32_0 = arith.constant 0 : i32
    %c0_i32_1 = arith.constant 0 : i32
    return %c0_i32, %c0_i32_0 : i32, i32
  }
  func.func @transform_2(%arg0: i32, %arg1: i32) -> (i32, i32) {
    %c0_i32 = arith.constant 0 : i32
    %c0_i32_0 = arith.constant 0 : i32
    %c0_i32_1 = arith.constant 0 : i32
    return %c0_i32, %c0_i32_0 : i32, i32
  }
  func.func @transform_3(%arg0: i32, %arg1: i32) -> (i32, i32) {
    %c0_i32 = arith.constant 0 : i32
    %c0_i32_0 = arith.constant 0 : i32
    %c0_i32_1 = arith.constant 0 : i32
    return %c0_i32, %c0_i32_0 : i32, i32
  }
  func.func @transform_4(%arg0: i32, %arg1: i32) -> (i32, i32) {
    %c0_i32 = arith.constant 0 : i32
    %c0_i32_0 = arith.constant 0 : i32
    %c0_i32_1 = arith.constant 0 : i32
    return %c0_i32, %c0_i32_0 : i32, i32
  }
  func.func @transform_5(%arg0: i32, %arg1: i32) -> (i32, i32, i32) {
    %c0_i32 = arith.constant 0 : i32
    %c0_i32_0 = arith.constant 0 : i32
    %c0_i32_1 = arith.constant 0 : i32
    return %arg0, %c0_i32, %c0_i32_0 : i32, i32, i32
  }
}

</mosaic_0001>

<llo_original>
// kernel: fused_mesh_em_forward.3
$region0: #{fused_mesh_em_forward.3}
  #allocation0 [shape = 'u32[]', space=smem, size = 0x4, offset = 0x4, fixed_abs, tag = 'smem constant byte address 0x4 - core index']
  #allocation1 [shape = 'u32[144,128]{1,0:T(1,128)}', space=vmem, size = 0x12000, scoped, tag = 'internal scratch']
  %s0 = inlined_call_operand.vmem [shape: f32[2,16,128], index: 0, kind: input, shape index: {}]
  %s1 = inlined_call_operand.vmem [shape: bf16[8,4], index: 1, kind: input, shape index: {}]
  %s2 = inlined_call_operand.vmem [shape: bf16[8,4], index: 2, kind: input, shape index: {}]
  %s3 = inlined_call_operand.vmem [shape: bf16[128,128], index: 3, kind: input, shape index: {}]
  %s4 = inlined_call_operand.vmem [shape: bf16[128,128], index: 4, kind: input, shape index: {}]
  %s5 = inlined_call_operand.vmem [shape: bf16[4,128], index: 5, kind: input, shape index: {}]
  %s6 = inlined_call_operand.vmem [shape: bf16[4,128], index: 6, kind: input, shape index: {}]
  %s7 = inlined_call_operand.vmem [shape: f32[1,128], index: 7, kind: input, shape index: {}]
  %s8 = inlined_call_operand.vmem [shape: bf16[128,128], index: 8, kind: input, shape index: {}]
  %s9 = inlined_call_operand.vmem [shape: f32[1,128], index: 9, kind: input, shape index: {}]
  %s10 = inlined_call_operand.vmem [shape: f32[8,128], index: 10, kind: output, shape index: {}]
  %s11 = sld [smem:[#allocation0]]
  $region50: #{fused_mesh_em_forward.3} parent=0
    _
  %s13 = ssub.s32 1, %s11
  %s14 = scalar_select 0, %s13, %s11
  // Predicated region
  $region2: #{fused_mesh_em_forward.3} parent=0 // pred_check
    _
  $region3: #{fused_mesh_em_forward.3} parent=0 // pred_check_branch
    %16 = sbr.rel (0) target = $region5
  $region4: #{fused_mesh_em_forward.3} parent=0 // pred_region
    _
  $region5: #{fused_mesh_em_forward.3} parent=0 // pred_fallthru
    _
  // Predicated region
  $region6: #{fused_mesh_em_forward.3} parent=0 // pred_check
    _
  $region7: #{fused_mesh_em_forward.3} parent=0 // pred_check_branch
    %18 = sbr.rel (0) target = $region9
  $region8: #{fused_mesh_em_forward.3} parent=0 // pred_region
    _
  $region9: #{fused_mesh_em_forward.3} parent=0 // pred_fallthru
    _
  // Predicated region
  $region10: #{fused_mesh_em_forward.3} parent=0 // pred_check
    _
  $region11: #{fused_mesh_em_forward.3} parent=0 // pred_check_branch
    %20 = sbr.rel (0) target = $region13
  $region12: #{fused_mesh_em_forward.3} parent=0 // pred_region
    _
  $region13: #{fused_mesh_em_forward.3} parent=0 // pred_fallthru
    _
  // Predicated region
  $region14: #{fused_mesh_em_forward.3} parent=0 // pred_check
    _
  $region15: #{fused_mesh_em_forward.3} parent=0 // pred_check_branch
    %22 = sbr.rel (0) target = $region17
  $region16: #{fused_mesh_em_forward.3} parent=0 // pred_region
    _
  $region17: #{fused_mesh_em_forward.3} parent=0 // pred_fallthru
    _
  // Predicated region
  $region18: #{fused_mesh_em_forward.3} parent=0 // pred_check
    _
  $region19: #{fused_mesh_em_forward.3} parent=0 // pred_check_branch
    %24 = sbr.rel (0) target = $region21
  $region20: #{fused_mesh_em_forward.3} parent=0 // pred_region
    _
  $region21: #{fused_mesh_em_forward.3} parent=0 // pred_fallthru
    _
  // Predicated region
  $region22: #{fused_mesh_em_forward.3} parent=0 // pred_check
    _
  $region23: #{fused_mesh_em_forward.3} parent=0 // pred_check_branch
    %26 = sbr.rel (0) target = $region25
  $region24: #{fused_mesh_em_forward.3} parent=0 // pred_region
    _
  $region25: #{fused_mesh_em_forward.3} parent=0 // pred_fallthru
    _
  // Predicated region
  $region26: #{fused_mesh_em_forward.3} parent=0 // pred_check
    _
  $region27: #{fused_mesh_em_forward.3} parent=0 // pred_check_branch
    %28 = sbr.rel (0) target = $region29
  $region28: #{fused_mesh_em_forward.3} parent=0 // pred_region
    _
  $region29: #{fused_mesh_em_forward.3} parent=0 // pred_fallthru
    _
  // Predicated region
  $region30: #{fused_mesh_em_forward.3} parent=0 // pred_check
    _
  $region31: #{fused_mesh_em_forward.3} parent=0 // pred_check_branch
    %30 = sbr.rel (0) target = $region33
  $region32: #{fused_mesh_em_forward.3} parent=0 // pred_region
    _
  $region33: #{fused_mesh_em_forward.3} parent=0 // pred_fallthru
    _
  // Predicated region
  $region34: #{fused_mesh_em_forward.3} parent=0 // pred_check
    _
  $region35: #{fused_mesh_em_forward.3} parent=0 // pred_check_branch
    %32 = sbr.rel (0) target = $region37
  $region36: #{fused_mesh_em_forward.3} parent=0 // pred_region
    _
  $region37: #{fused_mesh_em_forward.3} parent=0 // pred_fallthru
    _
  // Predicated region
  $region38: #{fused_mesh_em_forward.3} parent=0 // pred_check
    _
  $region39: #{fused_mesh_em_forward.3} parent=0 // pred_check_branch
    %34 = sbr.rel (0) target = $region41
  $region40: #{fused_mesh_em_forward.3} parent=0 // pred_region
    _
  $region41: #{fused_mesh_em_forward.3} parent=0 // pred_fallthru
    _
  %v36 = vld [vmem:[%s0] sm:$0xff]
  %v37 = vld [vmem:[%s0 + $0x8] sm:$0xff]
  %s38 = scalar_lea.vmem %s0, 16
  %v39 = vld [vmem:[%s38] sm:$0xff]
  %v40 = vld [vmem:[%s38 + $0x8] sm:$0xff]
  %v41 = vadd.f32 %v36, %v39
  %v42 = vadd.f32 %v37, %v40
  %v43 = vpack.c.bf16 %v41, %v41
  %v44 = vpack.c.bf16 %v42, %v42
  %v45 = vld [vmem:[%s3] sm:$0xf]
  %v46 = vld [vmem:[%s3 + $0x4] sm:$0xf]
  %v47 = vld [vmem:[%s3 + $0x8] sm:$0xf]
  %v48 = vld [vmem:[%s3 + $0xc] sm:$0xf]
  %v49 = vld [vmem:[%s3 + $0x10] sm:$0xf]
  %v50 = vld [vmem:[%s3 + $0x14] sm:$0xf]
  %v51 = vld [vmem:[%s3 + $0x18] sm:$0xf]
  %v52 = vld [vmem:[%s3 + $0x1c] sm:$0xf]
  %v53 = vld [vmem:[%s3 + $0x20] sm:$0xf]
  %v54 = vld [vmem:[%s3 + $0x24] sm:$0xf]
  %v55 = vld [vmem:[%s3 + $0x28] sm:$0xf]
  %v56 = vld [vmem:[%s3 + $0x2c] sm:$0xf]
  %v57 = vld [vmem:[%s3 + $0x30] sm:$0xf]
  %v58 = vld [vmem:[%s3 + $0x34] sm:$0xf]
  %v59 = vld [vmem:[%s3 + $0x38] sm:$0xf]
  %v60 = vld [vmem:[%s3 + $0x3c] sm:$0xf]
  %v61 = vld [vmem:[%s4] sm:$0xf]
  %v62 = vld [vmem:[%s4 + $0x4] sm:$0xf]
  %v63 = vld [vmem:[%s4 + $0x8] sm:$0xf]
  %v64 = vld [vmem:[%s4 + $0xc] sm:$0xf]
  %v65 = vld [vmem:[%s4 + $0x10] sm:$0xf]
  %v66 = vld [vmem:[%s4 + $0x14] sm:$0xf]
  %v67 = vld [vmem:[%s4 + $0x18] sm:$0xf]
  %v68 = vld [vmem:[%s4 + $0x1c] sm:$0xf]
  %v69 = vld [vmem:[%s4 + $0x20] sm:$0xf]
  %v70 = vld [vmem:[%s4 + $0x24] sm:$0xf]
  %v71 = vld [vmem:[%s4 + $0x28] sm:$0xf]
  %v72 = vld [vmem:[%s4 + $0x2c] sm:$0xf]
  %v73 = vld [vmem:[%s4 + $0x30] sm:$0xf]
  %v74 = vld [vmem:[%s4 + $0x34] sm:$0xf]
  %v75 = vld [vmem:[%s4 + $0x38] sm:$0xf]
  %v76 = vld [vmem:[%s4 + $0x3c] sm:$0xf]
  %v93 = vunpack.c.l.b16 %v61
  %v94 = vunpack.c.l.b16 %v62
  %v95 = vunpack.c.l.b16 %v63
  %v96 = vunpack.c.l.b16 %v64
  %v97 = vunpack.c.l.b16 %v65
  %v98 = vunpack.c.l.b16 %v66
  %v99 = vunpack.c.l.b16 %v67
  %v100 = vunpack.c.l.b16 %v68
  %v101 = vunpack.c.l.b16 %v69
  %v102 = vunpack.c.l.b16 %v70
  %v103 = vunpack.c.l.b16 %v71
  %v104 = vunpack.c.l.b16 %v72
  %v105 = vunpack.c.l.b16 %v73
  %v106 = vunpack.c.l.b16 %v74
  %v107 = vunpack.c.l.b16 %v75
  %v108 = vunpack.c.l.b16 %v76
  %v109 = vpack.c.b16 %v94, %v93
  %v110 = vpack.c.b16 %v96, %v95
  %v111 = vpack.c.b16 %v98, %v97
  %v112 = vpack.c.b16 %v100, %v99
  %v113 = vpack.c.b16 %v102, %v101
  %v114 = vpack.c.b16 %v104, %v103
  %v115 = vpack.c.b16 %v106, %v105
  %v116 = vpack.c.b16 %v108, %v107
  %125 = vmatprep.subr.bf16.mxu0 0
  %126 = vmatpush1.bf16.msra.mxu0 %v109
  %127 = vmatprep.subr.bf16.mxu0 0
  %128 = vmatpush1.bf16.msra.mxu0 %v110
  %129 = vmatprep.subr.bf16.mxu0 0
  %130 = vmatpush1.bf16.msra.mxu0 %v111
  %131 = vmatprep.subr.bf16.mxu0 0
  %132 = vmatpush1.bf16.msra.mxu0 %v112
  %133 = vmatprep.subr.bf16.mxu0 0
  %134 = vmatpush1.bf16.msra.mxu0 %v113
  %135 = vmatprep.subr.bf16.mxu0 0
  %136 = vmatpush1.bf16.msra.mxu0 %v114
  %137 = vmatprep.subr.bf16.mxu0 0
  %138 = vmatpush1.bf16.msra.mxu0 %v115
  %139 = vmatprep.subr.bf16.mxu0 0
  %140 = vmatpush1.bf16.msra.mxu0 %v116
  %141 = vmatprep.subr.bf16.mxu0 0
  %142 = vmatpush1.bf16.msra.mxu0 0
  %143 = vmatprep.subr.bf16.mxu0 0
  %144 = vmatpush1.bf16.msra.mxu0 0
  %145 = vmatprep.subr.bf16.mxu0 0
  %146 = vmatpush1.bf16.msra.mxu0 0
  %147 = vmatprep.subr.bf16.mxu0 0
  %148 = vmatpush1.bf16.msra.mxu0 0
  %149 = vmatprep.subr.bf16.mxu0 0
  %150 = vmatpush1.bf16.msra.mxu0 0
  %151 = vmatprep.subr.bf16.mxu0 0
  %152 = vmatpush1.bf16.msra.mxu0 0
  %153 = vmatprep.subr.bf16.mxu0 0
  %154 = vmatpush1.bf16.msra.mxu0 0
  %155 = vmatprep.subr.bf16.mxu0 0
  %156 = vmatpush1.bf16.msra.mxu0 0
  %157 = vmatprep.mubr.bf16.mxu0 0
  %158 = vmatmul.mubr.bf16.gmra.mrb[0].mxu0 %v44
  %v159 = vpop.f32.mrb[0].mxu0
  %v160 = vadd.f32 0.0, %v159
  %v161 = vpop.f32.mrb[0].mxu0
  %v162 = vpop.f32.mrb[0].mxu0
  %v163 = vpop.f32.mrb[0].mxu0
  %164 = vdwg.mxu0
  %v181 = vunpack.c.l.b16 %v45
  %v182 = vunpack.c.l.b16 %v46
  %v183 = vunpack.c.l.b16 %v47
  %v184 = vunpack.c.l.b16 %v48
  %v185 = vunpack.c.l.b16 %v49
  %v186 = vunpack.c.l.b16 %v50
  %v187 = vunpack.c.l.b16 %v51
  %v188 = vunpack.c.l.b16 %v52
  %v189 = vunpack.c.l.b16 %v53
  %v190 = vunpack.c.l.b16 %v54
  %v191 = vunpack.c.l.b16 %v55
  %v192 = vunpack.c.l.b16 %v56
  %v193 = vunpack.c.l.b16 %v57
  %v194 = vunpack.c.l.b16 %v58
  %v195 = vunpack.c.l.b16 %v59
  %v196 = vunpack.c.l.b16 %v60
  %v197 = vpack.c.b16 %v182, %v181
  %v198 = vpack.c.b16 %v184, %v183
  %v199 = vpack.c.b16 %v186, %v185
  %v200 = vpack.c.b16 %v188, %v187
  %v201 = vpack.c.b16 %v190, %v189
  %v202 = vpack.c.b16 %v192, %v191
  %v203 = vpack.c.b16 %v194, %v193
  %v204 = vpack.c.b16 %v196, %v195
  %213 = vmatprep.subr.bf16.mxu0 0
  %214 = vmatpush1.bf16.msra.mxu0 %v197
  %215 = vmatprep.subr.bf16.mxu0 0
  %216 = vmatpush1.bf16.msra.mxu0 %v198
  %217 = vmatprep.subr.bf16.mxu0 0
  %218 = vmatpush1.bf16.msra.mxu0 %v199
  %219 = vmatprep.subr.bf16.mxu0 0
  %220 = vmatpush1.bf16.msra.mxu0 %v200
  %221 = vmatprep.subr.bf16.mxu0 0
  %222 = vmatpush1.bf16.msra.mxu0 %v201
  %223 = vmatprep.subr.bf16.mxu0 0
  %224 = vmatpush1.bf16.msra.mxu0 %v202
  %225 = vmatprep.subr.bf16.mxu0 0
  %226 = vmatpush1.bf16.msra.mxu0 %v203
  %227 = vmatprep.subr.bf16.mxu0 0
  %228 = vmatpush1.bf16.msra.mxu0 %v204
  %229 = vmatprep.subr.bf16.mxu0 0
  %230 = vmatpush1.bf16.msra.mxu0 0
  %231 = vmatprep.subr.bf16.mxu0 0
  %232 = vmatpush1.bf16.msra.mxu0 0
  %233 = vmatprep.subr.bf16.mxu0 0
  %234 = vmatpush1.bf16.msra.mxu0 0
  %235 = vmatprep.subr.bf16.mxu0 0
  %236 = vmatpush1.bf16.msra.mxu0 0
  %237 = vmatprep.subr.bf16.mxu0 0
  %238 = vmatpush1.bf16.msra.mxu0 0
  %239 = vmatprep.subr.bf16.mxu0 0
  %240 = vmatpush1.bf16.msra.mxu0 0
  %241 = vmatprep.subr.bf16.mxu0 0
  %242 = vmatpush1.bf16.msra.mxu0 0
  %243 = vmatprep.subr.bf16.mxu0 0
  %244 = vmatpush1.bf16.msra.mxu0 0
  %245 = vmatprep.mubr.bf16.mxu0 0
  %246 = vmatmul.mubr.bf16.gmra.mrb[0].mxu0 %v43
  %v247 = vpop.f32.mrb[0].mxu0
  %v248 = vadd.f32 %v160, %v247
  %v249 = vpop.f32.mrb[0].mxu0
  %v250 = vpop.f32.mrb[0].mxu0
  %v251 = vpop.f32.mrb[0].mxu0
  %252 = vdwg.mxu0
  %v253 = vld [vmem:[%s1] sm:$0xf]
  %v254 = vld [vmem:[%s5] sm:$0x3]
  %vm255 = vcmask 31744
  %v257 = vsel %vm255, %v253, 0
  %vm259 = vcmask 1041408
  %v261 = vsel %vm259, %v254, 0
  %263 = vmatprep.subr.bf16.mxu0 0
  %264 = vmatpush1.bf16.msra.mxu0 %v261
  %265 = vmatprep.subr.bf16.mxu0 0
  %266 = vmatpush1.bf16.msra.mxu0 0
  %267 = vmatprep.subr.bf16.mxu0 0
  %268 = vmatpush1.bf16.msra.mxu0 0
  %269 = vmatprep.subr.bf16.mxu0 0
  %270 = vmatpush1.bf16.msra.mxu0 0
  %271 = vmatprep.subr.bf16.mxu0 0
  %272 = vmatpush1.bf16.msra.mxu0 0
  %273 = vmatprep.subr.bf16.mxu0 0
  %274 = vmatpush1.bf16.msra.mxu0 0
  %275 = vmatprep.subr.bf16.mxu0 0
  %276 = vmatpush1.bf16.msra.mxu0 0
  %277 = vmatprep.subr.bf16.mxu0 0
  %278 = vmatpush1.bf16.msra.mxu0 0
  %279 = vmatprep.subr.bf16.mxu0 0
  %280 = vmatpush1.bf16.msra.mxu0 0
  %281 = vmatprep.subr.bf16.mxu0 0
  %282 = vmatpush1.bf16.msra.mxu0 0
  %283 = vmatprep.subr.bf16.mxu0 0
  %284 = vmatpush1.bf16.msra.mxu0 0
  %285 = vmatprep.subr.bf16.mxu0 0
  %286 = vmatpush1.bf16.msra.mxu0 0
  %287 = vmatprep.subr.bf16.mxu0 0
  %288 = vmatpush1.bf16.msra.mxu0 0
  %289 = vmatprep.subr.bf16.mxu0 0
  %290 = vmatpush1.bf16.msra.mxu0 0
  %291 = vmatprep.subr.bf16.mxu0 0
  %292 = vmatpush1.bf16.msra.mxu0 0
  %293 = vmatprep.subr.bf16.mxu0 0
  %294 = vmatpush1.bf16.msra.mxu0 0
  %295 = vmatprep.mubr.bf16.mxu0 0
  %296 = vmatmul.mubr.bf16.gmra.mrb[0].mxu0 %v257
  %v297 = vpop.f32.mrb[0].mxu0
  %v298 = vadd.f32 0.0, %v297
  %v299 = vpop.f32.mrb[0].mxu0
  %v300 = vpop.f32.mrb[0].mxu0
  %v301 = vpop.f32.mrb[0].mxu0
  %302 = vdwg.mxu0
  %v303 = vadd.f32 %v248, %v298
  %v304 = vld [vmem:[%s2] sm:$0xf]
  %v305 = vld [vmem:[%s6] sm:$0x3]
  %v307 = vsel %vm255, %v304, 0
  %v310 = vsel %vm259, %v305, 0
  %312 = vmatprep.subr.bf16.mxu0 0
  %313 = vmatpush1.bf16.msra.mxu0 %v310
  %314 = vmatprep.subr.bf16.mxu0 0
  %315 = vmatpush1.bf16.msra.mxu0 0
  %316 = vmatprep.subr.bf16.mxu0 0
  %317 = vmatpush1.bf16.msra.mxu0 0
  %318 = vmatprep.subr.bf16.mxu0 0
  %319 = vmatpush1.bf16.msra.mxu0 0
  %320 = vmatprep.subr.bf16.mxu0 0
  %321 = vmatpush1.bf16.msra.mxu0 0
  %322 = vmatprep.subr.bf16.mxu0 0
  %323 = vmatpush1.bf16.msra.mxu0 0
  %324 = vmatprep.subr.bf16.mxu0 0
  %325 = vmatpush1.bf16.msra.mxu0 0
  %326 = vmatprep.subr.bf16.mxu0 0
  %327 = vmatpush1.bf16.msra.mxu0 0
  %328 = vmatprep.subr.bf16.mxu0 0
  %329 = vmatpush1.bf16.msra.mxu0 0
  %330 = vmatprep.subr.bf16.mxu0 0
  %331 = vmatpush1.bf16.msra.mxu0 0
  %332 = vmatprep.subr.bf16.mxu0 0
  %333 = vmatpush1.bf16.msra.mxu0 0
  %334 = vmatprep.subr.bf16.mxu0 0
  %335 = vmatpush1.bf16.msra.mxu0 0
  %336 = vmatprep.subr.bf16.mxu0 0
  %337 = vmatpush1.bf16.msra.mxu0 0
  %338 = vmatprep.subr.bf16.mxu0 0
  %339 = vmatpush1.bf16.msra.mxu0 0
  %340 = vmatprep.subr.bf16.mxu0 0
  %341 = vmatpush1.bf16.msra.mxu0 0
  %342 = vmatprep.subr.bf16.mxu0 0
  %343 = vmatpush1.bf16.msra.mxu0 0
  %344 = vmatprep.mubr.bf16.mxu0 0
  %345 = vmatmul.mubr.bf16.gmra.mrb[0].mxu0 %v307
  %v346 = vpop.f32.mrb[0].mxu0
  %v347 = vadd.f32 0.0, %v346
  %v348 = vpop.f32.mrb[0].mxu0
  %v349 = vpop.f32.mrb[0].mxu0
  %v350 = vpop.f32.mrb[0].mxu0
  %351 = vdwg.mxu0
  %v352 = vadd.f32 %v303, %v347
  %v353 = vld [vmem:[%s7] sm:$0x1]
  %v355 = vlaneseq
  %v356 = vshrl.u32 %v355, 7
  %v357 = vsub.s32 0, %v356
  %v358 = vrot.slane %v353, %v357
  %v360 = vadd.f32 %v352, %v358
  %v361 = vmax.f32 %v360, 0.0
  %v362 = vpack.c.bf16 %v361, %v361
  %v363 = vld [vmem:[%s8] sm:$0xf]
  %v364 = vld [vmem:[%s8 + $0x4] sm:$0xf]
  %v365 = vld [vmem:[%s8 + $0x8] sm:$0xf]
  %v366 = vld [vmem:[%s8 + $0xc] sm:$0xf]
  %v367 = vld [vmem:[%s8 + $0x10] sm:$0xf]
  %v368 = vld [vmem:[%s8 + $0x14] sm:$0xf]
  %v369 = vld [vmem:[%s8 + $0x18] sm:$0xf]
  %v370 = vld [vmem:[%s8 + $0x1c] sm:$0xf]
  %v371 = vld [vmem:[%s8 + $0x20] sm:$0xf]
  %v372 = vld [vmem:[%s8 + $0x24] sm:$0xf]
  %v373 = vld [vmem:[%s8 + $0x28] sm:$0xf]
  %v374 = vld [vmem:[%s8 + $0x2c] sm:$0xf]
  %v375 = vld [vmem:[%s8 + $0x30] sm:$0xf]
  %v376 = vld [vmem:[%s8 + $0x34] sm:$0xf]
  %v377 = vld [vmem:[%s8 + $0x38] sm:$0xf]
  %v378 = vld [vmem:[%s8 + $0x3c] sm:$0xf]
  %v379 = vld [vmem:[%s9] sm:$0x1]
  %v381 = vlaneseq
  %v382 = vshrl.u32 %v381, 7
  %v383 = vsub.s32 0, %v382
  %v384 = vrot.slane %v379, %v383
  %v402 = vunpack.c.l.b16 %v363
  %v403 = vunpack.c.l.b16 %v364
  %v404 = vunpack.c.l.b16 %v365
  %v405 = vunpack.c.l.b16 %v366
  %v406 = vunpack.c.l.b16 %v367
  %v407 = vunpack.c.l.b16 %v368
  %v408 = vunpack.c.l.b16 %v369
  %v409 = vunpack.c.l.b16 %v370
  %v410 = vunpack.c.l.b16 %v371
  %v411 = vunpack.c.l.b16 %v372
  %v412 = vunpack.c.l.b16 %v373
  %v413 = vunpack.c.l.b16 %v374
  %v414 = vunpack.c.l.b16 %v375
  %v415 = vunpack.c.l.b16 %v376
  %v416 = vunpack.c.l.b16 %v377
  %v417 = vunpack.c.l.b16 %v378
  %v418 = vpack.c.b16 %v403, %v402
  %v419 = vpack.c.b16 %v405, %v404
  %v420 = vpack.c.b16 %v407, %v406
  %v421 = vpack.c.b16 %v409, %v408
  %v422 = vpack.c.b16 %v411, %v410
  %v423 = vpack.c.b16 %v413, %v412
  %v424 = vpack.c.b16 %v415, %v414
  %v425 = vpack.c.b16 %v417, %v416
  %434 = vmatprep.subr.bf16.mxu0 0
  %435 = vmatpush1.bf16.msra.mxu0 %v418
  %436 = vmatprep.subr.bf16.mxu0 0
  %437 = vmatpush1.bf16.msra.mxu0 %v419
  %438 = vmatprep.subr.bf16.mxu0 0
  %439 = vmatpush1.bf16.msra.mxu0 %v420
  %440 = vmatprep.subr.bf16.mxu0 0
  %441 = vmatpush1.bf16.msra.mxu0 %v421
  %442 = vmatprep.subr.bf16.mxu0 0
  %443 = vmatpush1.bf16.msra.mxu0 %v422
  %444 = vmatprep.subr.bf16.mxu0 0
  %445 = vmatpush1.bf16.msra.mxu0 %v423
  %446 = vmatprep.subr.bf16.mxu0 0
  %447 = vmatpush1.bf16.msra.mxu0 %v424
  %448 = vmatprep.subr.bf16.mxu0 0
  %449 = vmatpush1.bf16.msra.mxu0 %v425
  %450 = vmatprep.subr.bf16.mxu0 0
  %451 = vmatpush1.bf16.msra.mxu0 0
  %452 = vmatprep.subr.bf16.mxu0 0
  %453 = vmatpush1.bf16.msra.mxu0 0
  %454 = vmatprep.subr.bf16.mxu0 0
  %455 = vmatpush1.bf16.msra.mxu0 0
  %456 = vmatprep.subr.bf16.mxu0 0
  %457 = vmatpush1.bf16.msra.mxu0 0
  %458 = vmatprep.subr.bf16.mxu0 0
  %459 = vmatpush1.bf16.msra.mxu0 0
  %460 = vmatprep.subr.bf16.mxu0 0
  %461 = vmatpush1.bf16.msra.mxu0 0
  %462 = vmatprep.subr.bf16.mxu0 0
  %463 = vmatpush1.bf16.msra.mxu0 0
  %464 = vmatprep.subr.bf16.mxu0 0
  %465 = vmatpush1.bf16.msra.mxu0 0
  %466 = vmatprep.mubr.bf16.mxu0 0
  %467 = vmatmul.mubr.bf16.gmra.mrb[0].mxu0 %v362
  %v468 = vpop.f32.mrb[0].mxu0
  %v469 = vadd.f32 %v384, %v468
  %v470 = vpop.f32.mrb[0].mxu0
  %v471 = vpop.f32.mrb[0].mxu0
  %v472 = vpop.f32.mrb[0].mxu0
  %473 = vdwg.mxu0
  %474 = vst [vmem:[%s10] sm:$0xff] %v469
  // Predicated region
  $region42: #{fused_mesh_em_forward.3} parent=0 // pred_check
    _
  $region43: #{fused_mesh_em_forward.3} parent=0 // pred_check_branch
    %476 = sbr.rel (0) target = $region45
  $region44: #{fused_mesh_em_forward.3} parent=0 // pred_region
    _
  $region45: #{fused_mesh_em_forward.3} parent=0 // pred_fallthru
    _
  // Predicated region
  $region46: #{fused_mesh_em_forward.3} parent=0 // pred_check
    _
  $region47: #{fused_mesh_em_forward.3} parent=0 // pred_check_branch
    %478 = sbr.rel (0) target = $region49
  $region48: #{fused_mesh_em_forward.3} parent=0 // pred_region
    _
  $region49: #{fused_mesh_em_forward.3} parent=0 // pred_fallthru
    _

// kernel: fused_mesh_em_forward.2
$region0: #{fused_mesh_em_forward.2}
  #allocation0 [shape = 'u32[]', space=smem, size = 0x4, offset = 0x4, fixed_abs, tag = 'smem constant byte address 0x4 - core index']
  #allocation1 [shape = 'u32[144,128]{1,0:T(1,128)}', space=vmem, size = 0x12000, scoped, tag = 'internal scratch']
  %s0 = inlined_call_operand.vmem [shape: bf16[256,3], index: 0, kind: input, shape index: {}]
  %s1 = inlined_call_operand.vmem [shape: bf16[3,32], index: 1, kind: input, shape index: {}]
  %s2 = inlined_call_operand.vmem [shape: f32[1,32], index: 2, kind: input, shape index: {}]
  %s3 = inlined_call_operand.vmem [shape: bf16[32,128], index: 3, kind: input, shape index: {}]
  %s4 = inlined_call_operand.vmem [shape: f32[1,128], index: 4, kind: input, shape index: {}]
  %s5 = inlined_call_operand.vmem [shape: f32[2,16,128], index: 5, kind: output, shape index: {}]
  %s6 = sld [smem:[#allocation0]]
  $region57: #{fused_mesh_em_forward.2} parent=0
    _
  %s8 = ssub.s32 1, %s6
  %s9 = scalar_select 0, %s8, %s6
  loop: start=0, step=1, limit=4
  $region2: #{fused_mesh_em_forward.2} parent=0 // loop_pre_header
    _
  $region3: #{fused_mesh_em_forward.2} parent=0 // loop_header
    %s11 = sphi 0, %s15
    %p12 = scmp.ge.s32.totalorder %s11, 4
    %s18 = sphi 0, %s30
    %s19 = sphi 0, %s26
    %s20 = sphi 0, %s18
    %s21 = sphi 0, %s19
    %s22 = sphi 0, %s20
    %s23 = sphi 0, %s21
    %s35 = sphi 0, %s37
    %s38 = sphi 0, %s35
    %s39 = sphi 0, %s38
    %s55 = sphi 0, %s39
    %s59 = sphi 0, %s59
    %s61 = sphi 0, %s59
    %s62 = sphi 0, %s61
    %s76 = sphi 0, %s62
    %s80 = sphi 0, %s80
    %s82 = sphi 0, %s80
    %s83 = sphi 0, %s82
    %s97 = sphi 0, %s83
    %s101 = sphi 0, %s101
    %s103 = sphi 0, %s101
    %s104 = sphi 0, %s103
    %s118 = sphi 0, %s104
    %s122 = sphi 0, %s122
    %s124 = sphi 0, %s122
    %s125 = sphi 0, %s124
    %s139 = sphi 0, %s125
    %s145 = sphi 0, %s147
    %s148 = sphi 0, %s145
    %s149 = sphi 0, %s148
    %s165 = sphi 0, %s149
  $region4: #{fused_mesh_em_forward.2} parent=0 // loop_header_branch
    %14 = sbr.rel (%p12) target = $region8
  $region5: #{fused_mesh_em_forward.2} parent=0 // loop_body
    %s16 = ssub.s32 %s11, 1
    %s17 = ssub.s32 %s11, 2
    %s24 = sadd.s32 1, %s19
    %p25 = scmp.ge.s32.totalorder %s24, 1
    %s26 = scalar_select %p25, 0, %s24
    %s27 = sadd.s32 1, %s18
    %s28 = scalar_select %p25, %s27, %s18
    %p29 = scmp.ge.s32.totalorder %s28, 2
    %s30 = scalar_select %p29, 0, %s28
    %s31 = sadd.s32 %s18, %s19
    %s32 = sadd.s32 %s30, %s26
    %s33 = ssub.s32 %s31, %s32
    %p34 = scmp.eq.s32.totalorder %s33, 0
    %s36 = sadd.s32 %s35, 1
    %s37 = scalar_select %p34, %s35, %s36
    %p40 = pneg %p34
    %p41 = scmp.eq.s32.totalorder %s11, 1
    %p42 = por %p40, %p41
    %p43 = scmp.ne.s32.totalorder %s35, %s38
    %p44 = scmp.eq.s32.totalorder %s11, 0
    %p45 = por %p43, %p44
    %p46 = scmp.ne.s32.totalorder %s35, %s38
    %p47 = scmp.eq.s32.totalorder %s16, 1
    %p48 = por %p46, %p47
    %p49 = scmp.ne.s32.totalorder %s38, %s39
    %p50 = scmp.eq.s32.totalorder %s16, 0
    %p51 = por %p49, %p50
    %p52 = scmp.ne.s32.totalorder %s38, %s39
    %p53 = scmp.eq.s32.totalorder %s17, 1
    %p54 = por %p52, %p53
    %p56 = scmp.ne.s32.totalorder %s39, %s55
    %p57 = scmp.eq.s32.totalorder %s17, 0
    %p58 = por %p56, %p57
    %s60 = sadd.s32 %s59, 1
    %p63 = scmp.eq.s32.totalorder %s11, 1
    %p64 = scmp.ne.s32.totalorder %s59, %s61
    %p65 = scmp.eq.s32.totalorder %s11, 0
    %p66 = por %p64, %p65
    %p67 = scmp.ne.s32.totalorder %s59, %s61
    %p68 = scmp.eq.s32.totalorder %s16, 1
    %p69 = por %p67, %p68
    %p70 = scmp.ne.s32.totalorder %s61, %s62
    %p71 = scmp.eq.s32.totalorder %s16, 0
    %p72 = por %p70, %p71
    %p73 = scmp.ne.s32.totalorder %s61, %s62
    %p74 = scmp.eq.s32.totalorder %s17, 1
    %p75 = por %p73, %p74
    %p77 = scmp.ne.s32.totalorder %s62, %s76
    %p78 = scmp.eq.s32.totalorder %s17, 0
    %p79 = por %p77, %p78
    %s81 = sadd.s32 %s80, 1
    %p84 = scmp.eq.s32.totalorder %s11, 1
    %p85 = scmp.ne.s32.totalorder %s80, %s82
    %p86 = scmp.eq.s32.totalorder %s11, 0
    %p87 = por %p85, %p86
    %p88 = scmp.ne.s32.totalorder %s80, %s82
    %p89 = scmp.eq.s32.totalorder %s16, 1
    %p90 = por %p88, %p89
    %p91 = scmp.ne.s32.totalorder %s82, %s83
    %p92 = scmp.eq.s32.totalorder %s16, 0
    %p93 = por %p91, %p92
    %p94 = scmp.ne.s32.totalorder %s82, %s83
    %p95 = scmp.eq.s32.totalorder %s17, 1
    %p96 = por %p94, %p95
    %p98 = scmp.ne.s32.totalorder %s83, %s97
    %p99 = scmp.eq.s32.totalorder %s17, 0
    %p100 = por %p98, %p99
    %s102 = sadd.s32 %s101, 1
    %p105 = scmp.eq.s32.totalorder %s11, 1
    %p106 = scmp.ne.s32.totalorder %s101, %s103
    %p107 = scmp.eq.s32.totalorder %s11, 0
    %p108 = por %p106, %p107
    %p109 = scmp.ne.s32.totalorder %s101, %s103
    %p110 = scmp.eq.s32.totalorder %s16, 1
    %p111 = por %p109, %p110
    %p112 = scmp.ne.s32.totalorder %s103, %s104
    %p113 = scmp.eq.s32.totalorder %s16, 0
    %p114 = por %p112, %p113
    %p115 = scmp.ne.s32.totalorder %s103, %s104
    %p116 = scmp.eq.s32.totalorder %s17, 1
    %p117 = por %p115, %p116
    %p119 = scmp.ne.s32.totalorder %s104, %s118
    %p120 = scmp.eq.s32.totalorder %s17, 0
    %p121 = por %p119, %p120
    %s123 = sadd.s32 %s122, 1
    %p126 = scmp.eq.s32.totalorder %s11, 1
    %p127 = scmp.ne.s32.totalorder %s122, %s124
    %p128 = scmp.eq.s32.totalorder %s11, 0
    %p129 = por %p127, %p128
    %p130 = scmp.ne.s32.totalorder %s122, %s124
    %p131 = scmp.eq.s32.totalorder %s16, 1
    %p132 = por %p130, %p131
    %p133 = scmp.ne.s32.totalorder %s124, %s125
    %p134 = scmp.eq.s32.totalorder %s16, 0
    %p135 = por %p133, %p134
    %p136 = scmp.ne.s32.totalorder %s124, %s125
    %p137 = scmp.eq.s32.totalorder %s17, 1
    %p138 = por %p136, %p137
    %p140 = scmp.ne.s32.totalorder %s125, %s139
    %p141 = scmp.eq.s32.totalorder %s17, 0
    %p142 = por %p140, %p141
    %s143 = ssub.s32 %s18, %s30
    %p144 = scmp.eq.s32.totalorder %s143, 0
    %s146 = sadd.s32 %s145, 1
    %s147 = scalar_select %p144, %s145, %s146
    %p150 = pneg %p144
    %p151 = scmp.eq.s32.totalorder %s11, 1
    %p152 = por %p150, %p151
    %p153 = scmp.ne.s32.totalorder %s145, %s148
    %p154 = scmp.eq.s32.totalorder %s11, 0
    %p155 = por %p153, %p154
    %p156 = scmp.ne.s32.totalorder %s145, %s148
    %p157 = scmp.eq.s32.totalorder %s16, 1
    %p158 = por %p156, %p157
    %p159 = scmp.ne.s32.totalorder %s148, %s149
    %p160 = scmp.eq.s32.totalorder %s16, 0
    %p161 = por %p159, %p160
    %p162 = scmp.ne.s32.totalorder %s148, %s149
    %p163 = scmp.eq.s32.totalorder %s17, 1
    %p164 = por %p162, %p163
    %p166 = scmp.ne.s32.totalorder %s149, %s165
    %p167 = scmp.eq.s32.totalorder %s17, 0
    %p168 = por %p166, %p167
    %p169 = scmp.le.s32.totalorder 1, %s11
    %p170 = scmp.lt.s32.totalorder %s11, 3
    %p171 = pnand %p169, %p170
    %p172 = pneg %p171
    // Predicated region
    $region9: #{fused_mesh_em_forward.2} parent=5 // pred_check
      _
    $region10: #{fused_mesh_em_forward.2} parent=5 // pred_check_branch
      %174 = sbr.rel (%p171) target = $region12
    $region11: #{fused_mesh_em_forward.2} parent=5 // pred_region
      %s175 = ssub.s32 %s11, 1
      // Predicated region
      $region13: #{fused_mesh_em_forward.2} parent=11 // pred_check
        %p176 = pneg %p72
      $region14: #{fused_mesh_em_forward.2} parent=11 // pred_check_branch
        %178 = sbr.rel (%p176) target = $region16
      $region15: #{fused_mesh_em_forward.2} parent=11 // pred_region
        _
      $region16: #{fused_mesh_em_forward.2} parent=11 // pred_fallthru
        _
      // Predicated region
      $region17: #{fused_mesh_em_forward.2} parent=11 // pred_check
        %p179 = pneg %p93
      $region18: #{fused_mesh_em_forward.2} parent=11 // pred_check_branch
        %181 = sbr.rel (%p179) target = $region20
      $region19: #{fused_mesh_em_forward.2} parent=11 // pred_region
        _
      $region20: #{fused_mesh_em_forward.2} parent=11 // pred_fallthru
        _
      // Predicated region
      $region21: #{fused_mesh_em_forward.2} parent=11 // pred_check
        %p182 = pneg %p114
      $region22: #{fused_mesh_em_forward.2} parent=11 // pred_check_branch
        %184 = sbr.rel (%p182) target = $region24
      $region23: #{fused_mesh_em_forward.2} parent=11 // pred_region
        _
      $region24: #{fused_mesh_em_forward.2} parent=11 // pred_fallthru
        _
      // Predicated region
      $region25: #{fused_mesh_em_forward.2} parent=11 // pred_check
        %p185 = pneg %p135
      $region26: #{fused_mesh_em_forward.2} parent=11 // pred_check_branch
        %187 = sbr.rel (%p185) target = $region28
      $region27: #{fused_mesh_em_forward.2} parent=11 // pred_region
        _
      $region28: #{fused_mesh_em_forward.2} parent=11 // pred_fallthru
        _
    $region12: #{fused_mesh_em_forward.2} parent=5 // pred_fallthru
      _
    %p188 = scmp.lt.s32.totalorder %s11, 2
    // Predicated region
    $region29: #{fused_mesh_em_forward.2} parent=5 // pred_check
      %p189 = pneg %p188
    $region30: #{fused_mesh_em_forward.2} parent=5 // pred_check_branch
      %191 = sbr.rel (%p189) target = $region32
    $region31: #{fused_mesh_em_forward.2} parent=5 // pred_region
      // Predicated region
      $region33: #{fused_mesh_em_forward.2} parent=31 // pred_check
        %p192 = pneg %p45
      $region34: #{fused_mesh_em_forward.2} parent=31 // pred_check_branch
        %194 = sbr.rel (%p192) target = $region36
      $region35: #{fused_mesh_em_forward.2} parent=31 // pred_region
        %s195 = sadd.s32 %s18, %s19
        %s196 = smul.u32 16, %s195
        %p197 = scmp.lt.s32.totalorder %s196, 31
        %s198 = scalar_select %p197, %s196, 31
        %s199 = smul.addr %s198, 4
        %s200 = scalar_lea.vmem %s0, %s199
        %s201 = sadd.s32 %s18, %s19
        %s202 = smul.u32 16, %s201
      $region36: #{fused_mesh_em_forward.2} parent=31 // pred_fallthru
        _
    $region32: #{fused_mesh_em_forward.2} parent=5 // pred_fallthru
      _
    %p203 = scmp.le.s32.totalorder 1, %s11
    %p204 = scmp.lt.s32.totalorder %s11, 3
    %p205 = pnand %p203, %p204
    %p206 = pneg %p205
    // Predicated region
    $region37: #{fused_mesh_em_forward.2} parent=5 // pred_check
      _
    $region38: #{fused_mesh_em_forward.2} parent=5 // pred_check_branch
      %208 = sbr.rel (%p205) target = $region40
    $region39: #{fused_mesh_em_forward.2} parent=5 // pred_region
      %s209 = ssub.s32 %s11, 1
      %s210 = sadd.s32 %s20, %s21
      %s211 = smul.u32 16, %s210
      %p212 = scmp.lt.s32.totalorder %s211, 31
      %s213 = scalar_select %p212, %s211, 31
      %s214 = smul.addr %s213, 4
      %s215 = scalar_lea.vmem %s0, %s214
      %p216 = pneg %p51
      %p217 = pneg %p48
      %p218 = pneg %p72
      %p219 = pneg %p69
      %p220 = pneg %p93
      %p221 = pneg %p90
      %p222 = pneg %p114
      %p223 = pneg %p111
      %p224 = pneg %p135
      %p225 = pneg %p132
      %p226 = pneg %p161
      %p227 = pneg %p158
      %p228 = scmp.lt.s32.totalorder %s20, 1
      %s229 = scalar_select %p228, %s20, 1
      %s230 = smul.addr %s229, 2
      %s231 = smul.addr %s230, 8
      %s232 = scalar_lea.vmem %s5, %s231
      %s233 = sadd.s32 %s20, %s21
      %s234 = smul.u32 16, %s233
      %p235 = scmp.lt.s32.totalorder %s234, 31
      %s236 = scalar_select %p235, %s234, 31
      %s237 = smul.addr %s236, 4
      %s238 = scalar_lea.vmem %s0, %s237
      %s239 = sadd.s32 %s20, %s21
      %s240 = smul.u32 16, %s239
      %p241 = scmp.lt.s32.totalorder %s20, 1
      %s242 = scalar_select %p241, %s20, 1
      %s243 = smul.addr %s242, 2
      %s244 = smul.addr %s243, 8
      %s245 = scalar_lea.vmem %s5, %s244
      %p247 = scmp.eq.s32.totalorder %s21, 0
      // Predicated region
      $region41: #{fused_mesh_em_forward.2} parent=39 // pred_check
        %p248 = pneg %p247
      $region42: #{fused_mesh_em_forward.2} parent=39 // pred_check_branch
        %250 = sbr.rel (%p248) target = $region44
      $region43: #{fused_mesh_em_forward.2} parent=39 // pred_region
        %251 = vst [vmem:[%s245] sm:$0xff] 0.0
        %252 = vst [vmem:[%s245 + $0x8] sm:$0xff] 0.0
      $region44: #{fused_mesh_em_forward.2} parent=39 // pred_fallthru
        _
      %v253 = vld [vmem:[%s238] sm:$0xf]
      %v254 = vld [vmem:[%s238 + $0x4] sm:$0xf]
      %v255 = vld [vmem:[%s238 + $0x8] sm:$0xf]
      %v256 = vld [vmem:[%s238 + $0xc] sm:$0xf]
      %v257 = vld [vmem:[%s238 + $0x10] sm:$0xf]
      %v258 = vld [vmem:[%s238 + $0x14] sm:$0xf]
      %v259 = vld [vmem:[%s238 + $0x18] sm:$0xf]
      %v260 = vld [vmem:[%s238 + $0x1c] sm:$0xf]
      %v261 = vld [vmem:[%s238 + $0x20] sm:$0xf]
      %v262 = vld [vmem:[%s238 + $0x24] sm:$0xf]
      %v263 = vld [vmem:[%s238 + $0x28] sm:$0xf]
      %v264 = vld [vmem:[%s238 + $0x2c] sm:$0xf]
      %v265 = vld [vmem:[%s238 + $0x30] sm:$0xf]
      %v266 = vld [vmem:[%s238 + $0x34] sm:$0xf]
      %v267 = vld [vmem:[%s238 + $0x38] sm:$0xf]
      %v268 = vld [vmem:[%s238 + $0x3c] sm:$0xf]
      %v269 = vld [vmem:[%s1] sm:$0x3]
      %v270 = vld [vmem:[%s2] sm:$0x1]
      %v272 = vlaneseq
      %v273 = vshrl.u32 %v272, 7
      %v274 = vsub.s32 0, %v273
      %v275 = vrot.slane %v270, %v274
      %v293 = vunpack.c.l.b16 %v253
      %v294 = vunpack.c.l.b16 %v254
      %v295 = vunpack.c.l.b16 %v255
      %v296 = vunpack.c.l.b16 %v256
      %v297 = vunpack.c.l.b16 %v257
      %v298 = vunpack.c.l.b16 %v258
      %v299 = vunpack.c.l.b16 %v259
      %v300 = vunpack.c.l.b16 %v260
      %v301 = vunpack.c.l.b16 %v261
      %v302 = vunpack.c.l.b16 %v262
      %v303 = vunpack.c.l.b16 %v263
      %v304 = vunpack.c.l.b16 %v264
      %v305 = vunpack.c.l.b16 %v265
      %v306 = vunpack.c.l.b16 %v266
      %v307 = vunpack.c.l.b16 %v267
      %v308 = vunpack.c.l.b16 %v268
      %v309 = vpack.c.b16 %v294, %v293
      %v310 = vpack.c.b16 %v296, %v295
      %v311 = vpack.c.b16 %v298, %v297
      %v312 = vpack.c.b16 %v300, %v299
      %v313 = vpack.c.b16 %v302, %v301
      %v314 = vpack.c.b16 %v304, %v303
      %v315 = vpack.c.b16 %v306, %v305
      %v316 = vpack.c.b16 %v308, %v307
      %vm317 = vcmask 23552
      %v319 = vsel %vm317, %v309, 0
      %v322 = vsel %vm317, %v310, 0
      %v325 = vsel %vm317, %v311, 0
      %v328 = vsel %vm317, %v312, 0
      %v331 = vsel %vm317, %v313, 0
      %v334 = vsel %vm317, %v314, 0
      %v337 = vsel %vm317, %v315, 0
      %v340 = vsel %vm317, %v316, 0
      %vm342 = vcmask 1040384
      %vm343 = vcmask 1041408
      %v344 = vsel %vm342, 4294967295, 65535
      %v345 = vsel %vm343, %v344, 0
      %v347 = vand.u32 %v269, %v345
      %349 = vmatprep.subr.bf16.mxu0 0
      %350 = vmatpush1.bf16.msra.mxu0 %v347
      %351 = vmatprep.subr.bf16.mxu0 0
      %352 = vmatpush1.bf16.msra.mxu0 0
      %353 = vmatprep.subr.bf16.mxu0 0
      %354 = vmatpush1.bf16.msra.mxu0 0
      %355 = vmatprep.subr.bf16.mxu0 0
      %356 = vmatpush1.bf16.msra.mxu0 0
      %357 = vmatprep.subr.bf16.mxu0 0
      %358 = vmatpush1.bf16.msra.mxu0 0
      %359 = vmatprep.subr.bf16.mxu0 0
      %360 = vmatpush1.bf16.msra.mxu0 0
      %361 = vmatprep.subr.bf16.mxu0 0
      %362 = vmatpush1.bf16.msra.mxu0 0
      %363 = vmatprep.subr.bf16.mxu0 0
      %364 = vmatpush1.bf16.msra.mxu0 0
      %365 = vmatprep.subr.bf16.mxu0 0
      %366 = vmatpush1.bf16.msra.mxu0 0
      %367 = vmatprep.subr.bf16.mxu0 0
      %368 = vmatpush1.bf16.msra.mxu0 0
      %369 = vmatprep.subr.bf16.mxu0 0
      %370 = vmatpush1.bf16.msra.mxu0 0
      %371 = vmatprep.subr.bf16.mxu0 0
      %372 = vmatpush1.bf16.msra.mxu0 0
      %373 = vmatprep.subr.bf16.mxu0 0
      %374 = vmatpush1.bf16.msra.mxu0 0
      %375 = vmatprep.subr.bf16.mxu0 0
      %376 = vmatpush1.bf16.msra.mxu0 0
      %377 = vmatprep.subr.bf16.mxu0 0
      %378 = vmatpush1.bf16.msra.mxu0 0
      %379 = vmatprep.subr.bf16.mxu0 0
      %380 = vmatpush1.bf16.msra.mxu0 0
      %381 = vmatprep.mubr.bf16.mxu0 0
      %382 = vmatmul.mubr.bf16.gmra.mrb[0].mxu0 %v319
      %v383 = vpop.f32.mrb[0].mxu0
      %v384 = vadd.f32 %v275, %v383
      %v385 = vpop.f32.mrb[0].mxu0
      %v386 = vpop.f32.mrb[0].mxu0
      %v387 = vadd.f32 %v275, %v386
      %v388 = vpop.f32.mrb[0].mxu0
      %389 = vmatprep.mubr.bf16.mxu0 0
      %390 = vmatmul.mubr.bf16.gmra.mrb[0].mxu0 %v322
      %v391 = vpop.f32.mrb[0].mxu0
      %v392 = vadd.f32 %v275, %v391
      %v393 = vpop.f32.mrb[0].mxu0
      %v394 = vpop.f32.mrb[0].mxu0
      %v395 = vadd.f32 %v275, %v394
      %v396 = vpop.f32.mrb[0].mxu0
      %397 = vmatprep.mubr.bf16.mxu0 0
      %398 = vmatmul.mubr.bf16.gmra.mrb[0].mxu0 %v325
      %v399 = vpop.f32.mrb[0].mxu0
      %v400 = vadd.f32 %v275, %v399
      %v401 = vpop.f32.mrb[0].mxu0
      %v402 = vpop.f32.mrb[0].mxu0
      %v403 = vadd.f32 %v275, %v402
      %v404 = vpop.f32.mrb[0].mxu0
      %405 = vmatprep.mubr.bf16.mxu0 0
      %406 = vmatmul.mubr.bf16.gmra.mrb[0].mxu0 %v328
      %v407 = vpop.f32.mrb[0].mxu0
      %v408 = vadd.f32 %v275, %v407
      %v409 = vpop.f32.mrb[0].mxu0
      %v410 = vpop.f32.mrb[0].mxu0
      %v411 = vadd.f32 %v275, %v410
      %v412 = vpop.f32.mrb[0].mxu0
      %413 = vmatprep.mubr.bf16.mxu0 0
      %414 = vmatmul.mubr.bf16.gmra.mrb[0].mxu0 %v331
      %v415 = vpop.f32.mrb[0].mxu0
      %v416 = vadd.f32 %v275, %v415
      %v417 = vpop.f32.mrb[0].mxu0
      %v418 = vpop.f32.mrb[0].mxu0
      %v419 = vadd.f32 %v275, %v418
      %v420 = vpop.f32.mrb[0].mxu0
      %421 = vmatprep.mubr.bf16.mxu0 0
      %422 = vmatmul.mubr.bf16.gmra.mrb[0].mxu0 %v334
      %v423 = vpop.f32.mrb[0].mxu0
      %v424 = vadd.f32 %v275, %v423
      %v425 = vpop.f32.mrb[0].mxu0
      %v426 = vpop.f32.mrb[0].mxu0
      %v427 = vadd.f32 %v275, %v426
      %v428 = vpop.f32.mrb[0].mxu0
      %429 = vmatprep.mubr.bf16.mxu0 0
      %430 = vmatmul.mubr.bf16.gmra.mrb[0].mxu0 %v337
      %v431 = vpop.f32.mrb[0].mxu0
      %v432 = vadd.f32 %v275, %v431
      %v433 = vpop.f32.mrb[0].mxu0
      %v434 = vpop.f32.mrb[0].mxu0
      %v435 = vadd.f32 %v275, %v434
      %v436 = vpop.f32.mrb[0].mxu0
      %437 = vmatprep.mubr.bf16.mxu0 0
      %438 = vmatmul.mubr.bf16.gmra.mrb[0].mxu0 %v340
      %v439 = vpop.f32.mrb[0].mxu0
      %v440 = vadd.f32 %v275, %v439
      %v441 = vpop.f32.mrb[0].mxu0
      %v442 = vpop.f32.mrb[0].mxu0
      %v443 = vadd.f32 %v275, %v442
      %v444 = vpop.f32.mrb[0].mxu0
      %445 = vdwg.mxu0
      %v446 = vmax.f32 %v384, 0.0
      %v447 = vmax.f32 %v387, 0.0
      %v448 = vmax.f32 %v392, 0.0
      %v449 = vmax.f32 %v395, 0.0
      %v450 = vmax.f32 %v400, 0.0
      %v451 = vmax.f32 %v403, 0.0
      %v452 = vmax.f32 %v408, 0.0
      %v453 = vmax.f32 %v411, 0.0
      %v454 = vmax.f32 %v416, 0.0
      %v455 = vmax.f32 %v419, 0.0
      %v456 = vmax.f32 %v424, 0.0
      %v457 = vmax.f32 %v427, 0.0
      %v458 = vmax.f32 %v432, 0.0
      %v459 = vmax.f32 %v435, 0.0
      %v460 = vmax.f32 %v440, 0.0
      %v461 = vmax.f32 %v443, 0.0
      %v462 = vpack.c.bf16 %v447, %v446
      %v463 = vpack.c.bf16 %v449, %v448
      %v464 = vpack.c.bf16 %v451, %v450
      %v465 = vpack.c.bf16 %v453, %v452
      %v466 = vpack.c.bf16 %v455, %v454
      %v467 = vpack.c.bf16 %v457, %v456
      %v468 = vpack.c.bf16 %v459, %v458
      %v469 = vpack.c.bf16 %v461, %v460
      %v470 = vld [vmem:[%s3] sm:$0xf]
      %v471 = vld [vmem:[%s3 + $0x4] sm:$0xf]
      %v472 = vld [vmem:[%s3 + $0x8] sm:$0xf]
      %v473 = vld [vmem:[%s3 + $0xc] sm:$0xf]
      %v474 = vld [vmem:[%s4] sm:$0x1]
      %v476 = vlaneseq
      %v477 = vshrl.u32 %v476, 7
      %v478 = vsub.s32 0, %v477
      %v479 = vrot.slane %v474, %v478
      %v485 = vunpack.c.l.b16 %v470
      %v486 = vunpack.c.l.b16 %v471
      %v487 = vunpack.c.l.b16 %v472
      %v488 = vunpack.c.l.b16 %v473
      %v489 = vpack.c.b16 %v486, %v485
      %v490 = vpack.c.b16 %v488, %v487
      %vm493 = vcmask 261120
      %v495 = vsel %vm493, %v462, 0
      %v498 = vsel %vm493, %v463, 0
      %v501 = vsel %vm493, %v464, 0
      %v504 = vsel %vm493, %v465, 0
      %v507 = vsel %vm493, %v466, 0
      %v510 = vsel %vm493, %v467, 0
      %v513 = vsel %vm493, %v468, 0
      %v516 = vsel %vm493, %v469, 0
      %518 = vmatprep.subr.bf16.mxu0 0
      %519 = vmatpush1.bf16.msra.mxu0 %v489
      %520 = vmatprep.subr.bf16.mxu0 0
      %521 = vmatpush1.bf16.msra.mxu0 %v490
      %522 = vmatprep.subr.bf16.mxu0 0
      %523 = vmatpush1.bf16.msra.mxu0 0
      %524 = vmatprep.subr.bf16.mxu0 0
      %525 = vmatpush1.bf16.msra.mxu0 0
      %526 = vmatprep.subr.bf16.mxu0 0
      %527 = vmatpush1.bf16.msra.mxu0 0
      %528 = vmatprep.subr.bf16.mxu0 0
      %529 = vmatpush1.bf16.msra.mxu0 0
      %530 = vmatprep.subr.bf16.mxu0 0
      %531 = vmatpush1.bf16.msra.mxu0 0
      %532 = vmatprep.subr.bf16.mxu0 0
      %533 = vmatpush1.bf16.msra.mxu0 0
      %534 = vmatprep.subr.bf16.mxu0 0
      %535 = vmatpush1.bf16.msra.mxu0 0
      %536 = vmatprep.subr.bf16.mxu0 0
      %537 = vmatpush1.bf16.msra.mxu0 0
      %538 = vmatprep.subr.bf16.mxu0 0
      %539 = vmatpush1.bf16.msra.mxu0 0
      %540 = vmatprep.subr.bf16.mxu0 0
      %541 = vmatpush1.bf16.msra.mxu0 0
      %542 = vmatprep.subr.bf16.mxu0 0
      %543 = vmatpush1.bf16.msra.mxu0 0
      %544 = vmatprep.subr.bf16.mxu0 0
      %545 = vmatpush1.bf16.msra.mxu0 0
      %546 = vmatprep.subr.bf16.mxu0 0
      %547 = vmatpush1.bf16.msra.mxu0 0
      %548 = vmatprep.subr.bf16.mxu0 0
      %549 = vmatpush1.bf16.msra.mxu0 0
      %550 = vmatprep.mubr.bf16.mxu0 0
      %551 = vmatmul.mubr.bf16.gmra.mrb[0].mxu0 %v495
      %v552 = vpop.f32.mrb[0].mxu0
      %v553 = vadd.f32 %v479, %v552
      %v554 = vpop.f32.mrb[0].mxu0
      %v555 = vpop.f32.mrb[0].mxu0
      %v556 = vadd.f32 %v479, %v555
      %v557 = vpop.f32.mrb[0].mxu0
      %558 = vmatprep.mubr.bf16.mxu0 0
      %559 = vmatmul.mubr.bf16.gmra.mrb[0].mxu0 %v498
      %v560 = vpop.f32.mrb[0].mxu0
      %v561 = vadd.f32 %v479, %v560
      %v562 = vpop.f32.mrb[0].mxu0
      %v563 = vpop.f32.mrb[0].mxu0
      %v564 = vadd.f32 %v479, %v563
      %v565 = vpop.f32.mrb[0].mxu0
      %566 = vmatprep.mubr.bf16.mxu0 0
      %567 = vmatmul.mubr.bf16.gmra.mrb[0].mxu0 %v501
      %v568 = vpop.f32.mrb[0].mxu0
      %v569 = vadd.f32 %v479, %v568
      %v570 = vpop.f32.mrb[0].mxu0
      %v571 = vpop.f32.mrb[0].mxu0
      %v572 = vadd.f32 %v479, %v571
      %v573 = vpop.f32.mrb[0].mxu0
      %574 = vmatprep.mubr.bf16.mxu0 0
      %575 = vmatmul.mubr.bf16.gmra.mrb[0].mxu0 %v504
      %v576 = vpop.f32.mrb[0].mxu0
      %v577 = vadd.f32 %v479, %v576
      %v578 = vpop.f32.mrb[0].mxu0
      %v579 = vpop.f32.mrb[0].mxu0
      %v580 = vadd.f32 %v479, %v579
      %v581 = vpop.f32.mrb[0].mxu0
      %582 = vmatprep.mubr.bf16.mxu0 0
      %583 = vmatmul.mubr.bf16.gmra.mrb[0].mxu0 %v507
      %v584 = vpop.f32.mrb[0].mxu0
      %v585 = vadd.f32 %v479, %v584
      %v586 = vpop.f32.mrb[0].mxu0
      %v587 = vpop.f32.mrb[0].mxu0
      %v588 = vadd.f32 %v479, %v587
      %v589 = vpop.f32.mrb[0].mxu0
      %590 = vmatprep.mubr.bf16.mxu0 0
      %591 = vmatmul.mubr.bf16.gmra.mrb[0].mxu0 %v510
      %v592 = vpop.f32.mrb[0].mxu0
      %v593 = vadd.f32 %v479, %v592
      %v594 = vpop.f32.mrb[0].mxu0
      %v595 = vpop.f32.mrb[0].mxu0
      %v596 = vadd.f32 %v479, %v595
      %v597 = vpop.f32.mrb[0].mxu0
      %598 = vmatprep.mubr.bf16.mxu0 0
      %599 = vmatmul.mubr.bf16.gmra.mrb[0].mxu0 %v513
      %v600 = vpop.f32.mrb[0].mxu0
      %v601 = vadd.f32 %v479, %v600
      %v602 = vpop.f32.mrb[0].mxu0
      %v603 = vpop.f32.mrb[0].mxu0
      %v604 = vadd.f32 %v479, %v603
      %v605 = vpop.f32.mrb[0].mxu0
      %606 = vmatprep.mubr.bf16.mxu0 0
      %607 = vmatmul.mubr.bf16.gmra.mrb[0].mxu0 %v516
      %v608 = vpop.f32.mrb[0].mxu0
      %v609 = vadd.f32 %v479, %v608
      %v610 = vpop.f32.mrb[0].mxu0
      %v611 = vpop.f32.mrb[0].mxu0
      %v612 = vadd.f32 %v479, %v611
      %v613 = vpop.f32.mrb[0].mxu0
      %614 = vdwg.mxu0
      %v615 = vmax.f32 %v553, 0.0
      %v616 = vmax.f32 %v556, 0.0
      %v617 = vmax.f32 %v561, 0.0
      %v618 = vmax.f32 %v564, 0.0
      %v619 = vmax.f32 %v569, 0.0
      %v620 = vmax.f32 %v572, 0.0
      %v621 = vmax.f32 %v577, 0.0
      %v622 = vmax.f32 %v580, 0.0
      %v623 = vmax.f32 %v585, 0.0
      %v624 = vmax.f32 %v588, 0.0
      %v625 = vmax.f32 %v593, 0.0
      %v626 = vmax.f32 %v596, 0.0
      %v627 = vmax.f32 %v601, 0.0
      %v628 = vmax.f32 %v604, 0.0
      %v629 = vmax.f32 %v609, 0.0
      %v630 = vmax.f32 %v612, 0.0
      %s631 = sadd.s32 %s20, %s21
      %s632 = smul.u32 %s631, 128
      %v633 = vlaneseq
      %v634 = vand.u32 %v633, 127
      %v635 = vstv %s632
      %v636 = vadd.s32 %v635, %v634
      %v637 = vlaneseq
      %v638 = vshrl.u32 %v637, 7
      %v639 = vadd.s32 %v638, 8
      %vm640 = vcmp.lt.s32.totalorder %v638, 8
      %vm641 = vcmp.lt.s32.totalorder %v639, 8
      %v642 = vsub.s32 %v638, 8
      %v643 = vsel %vm640, %v638, %v642
      %v644 = vsel %vm641, %v639, %v638
      %v645 = vmul.u32 %v643, 64
      %v646 = vmul.u32 %v644, 64
      %v647 = vmul.u32 %v643, 32
      %v648 = vmul.u32 %v644, 32
      %v649 = vadd.s32 %v647, 128
      %v650 = vadd.s32 %v648, 128
      %v651 = vsel %vm640, %v645, %v649
      %v652 = vsel %vm641, %v646, %v650
      %v653 = vsel %vm640, 64, 32
      %v654 = vsel %vm641, 64, 32
      %v655 = vadd.s32 %v651, %v653
      %v656 = vadd.s32 %v652, %v654
      %v657 = vsel %vm640, 0.015625, 0.03125
      %v658 = vsel %vm641, 0.015625, 0.03125
      %vm659 = vcmp.ge.s32.totalorder %v636, %v651
      %vm660 = vcmp.ge.s32.totalorder %v636, %v652
      %vm661 = vcmp.lt.s32.totalorder %v636, %v655
      %vm662 = vcmp.lt.s32.totalorder %v636, %v656
      %vm663 = vmand %vm659, %vm661
      %vm664 = vmand %vm660, %vm662
      %vm665 = vcmp.lt.s32.totalorder %v643, 2
      %vm666 = vcmp.lt.s32.totalorder %v644, 2
      %vm667 = vmand %vm663, %vm665
      %vm668 = vmand %vm664, %vm666
      %v669 = vsel %vm667, %v657, 0.0
      %v670 = vsel %vm668, %v658, 0.0
      %v671 = vld [vmem:[%s245] sm:$0xff]
      %v672 = vld [vmem:[%s245 + $0x8] sm:$0xff]
      %v673 = vpack.c.bf16 %v670, %v669
      %v674 = vpack.c.bf16 %v616, %v615
      %v675 = vpack.c.bf16 %v618, %v617
      %v676 = vpack.c.bf16 %v620, %v619
      %v677 = vpack.c.bf16 %v622, %v621
      %v678 = vpack.c.bf16 %v624, %v623
      %v679 = vpack.c.bf16 %v626, %v625
      %v680 = vpack.c.bf16 %v628, %v627
      %v681 = vpack.c.bf16 %v630, %v629
      %682 = vmatprep.subr.bf16.mxu0 0
      %683 = vmatpush1.bf16.msra.mxu0 %v674
      %684 = vmatprep.subr.bf16.mxu0 0
      %685 = vmatpush1.bf16.msra.mxu0 %v675
      %686 = vmatprep.subr.bf16.mxu0 0
      %687 = vmatpush1.bf16.msra.mxu0 %v676
      %688 = vmatprep.subr.bf16.mxu0 0
      %689 = vmatpush1.bf16.msra.mxu0 %v677
      %690 = vmatprep.subr.bf16.mxu0 0
      %691 = vmatpush1.bf16.msra.mxu0 %v678
      %692 = vmatprep.subr.bf16.mxu0 0
      %693 = vmatpush1.bf16.msra.mxu0 %v679
      %694 = vmatprep.subr.bf16.mxu0 0
      %695 = vmatpush1.bf16.msra.mxu0 %v680
      %696 = vmatprep.subr.bf16.mxu0 0
      %697 = vmatpush1.bf16.msra.mxu0 %v681
      %698 = vmatprep.subr.bf16.mxu0 0
      %699 = vmatpush1.bf16.msra.mxu0 0
      %700 = vmatprep.subr.bf16.mxu0 0
      %701 = vmatpush1.bf16.msra.mxu0 0
      %702 = vmatprep.subr.bf16.mxu0 0
      %703 = vmatpush1.bf16.msra.mxu0 0
      %704 = vmatprep.subr.bf16.mxu0 0
      %705 = vmatpush1.bf16.msra.mxu0 0
      %706 = vmatprep.subr.bf16.mxu0 0
      %707 = vmatpush1.bf16.msra.mxu0 0
      %708 = vmatprep.subr.bf16.mxu0 0
      %709 = vmatpush1.bf16.msra.mxu0 0
      %710 = vmatprep.subr.bf16.mxu0 0
      %711 = vmatpush1.bf16.msra.mxu0 0
      %712 = vmatprep.subr.bf16.mxu0 0
      %713 = vmatpush1.bf16.msra.mxu0 0
      %714 = vmatprep.mubr.bf16.mxu0 0
      %715 = vmatmul.mubr.bf16.gmra.mrb[0].mxu0 %v673
      %v716 = vpop.f32.mrb[0].mxu0
      %v717 = vadd.f32 0.0, %v716
      %v718 = vpop.f32.mrb[0].mxu0
      %v719 = vpop.f32.mrb[0].mxu0
      %v720 = vadd.f32 0.0, %v719
      %v721 = vpop.f32.mrb[0].mxu0
      %722 = vdwg.mxu0
      %v723 = vadd.f32 %v671, %v717
      %v724 = vadd.f32 %v672, %v720
      %725 = vst [vmem:[%s245] sm:$0xff] %v723
      %726 = vst [vmem:[%s245 + $0x8] sm:$0xff] %v724
      %p727 = scmp.lt.s32.totalorder %s20, 1
      %s728 = scalar_select %p727, %s20, 1
      %s729 = smul.addr %s728, 2
      %s730 = smul.addr %s729, 8
      %s731 = scalar_lea.vmem %s5, %s730
      // Predicated region
      $region45: #{fused_mesh_em_forward.2} parent=39 // pred_check
        %p732 = pneg %p158
      $region46: #{fused_mesh_em_forward.2} parent=39 // pred_check_branch
        %734 = sbr.rel (%p732) target = $region48
      $region47: #{fused_mesh_em_forward.2} parent=39 // pred_region
        _
      $region48: #{fused_mesh_em_forward.2} parent=39 // pred_fallthru
        _
    $region40: #{fused_mesh_em_forward.2} parent=5 // pred_fallthru
      _
    %p735 = scmp.le.s32.totalorder 2, %s11
    // Predicated region
    $region49: #{fused_mesh_em_forward.2} parent=5 // pred_check
      %p736 = pneg %p735
    $region50: #{fused_mesh_em_forward.2} parent=5 // pred_check_branch
      %738 = sbr.rel (%p736) target = $region52
    $region51: #{fused_mesh_em_forward.2} parent=5 // pred_region
      %s739 = ssub.s32 %s11, 2
      // Predicated region
      $region53: #{fused_mesh_em_forward.2} parent=51 // pred_check
        %p740 = pneg %p164
      $region54: #{fused_mesh_em_forward.2} parent=51 // pred_check_branch
        %742 = sbr.rel (%p740) target = $region56
      $region55: #{fused_mesh_em_forward.2} parent=51 // pred_region
        %p743 = scmp.lt.s32.totalorder %s22, 1
        %s744 = scalar_select %p743, %s22, 1
        %s745 = smul.addr %s744, 2
        %s746 = smul.addr %s745, 8
        %s747 = scalar_lea.vmem %s5, %s746
      $region56: #{fused_mesh_em_forward.2} parent=51 // pred_fallthru
        _
    $region52: #{fused_mesh_em_forward.2} parent=5 // pred_fallthru
      _
  $region6: #{fused_mesh_em_forward.2} parent=0 // loop_footer
    %s15 = sadd.s32 1, %s11
  $region7: #{fused_mesh_em_forward.2} parent=0 // loop_footer_branch
    %10 = sbr.rel target = $region3
  $region8: #{fused_mesh_em_forward.2} parent=0 // loop_exit
    _

</llo_original>
